<compile_context>
chip_gen: v6e
topology: v6e:2x2x1
jax: 0.10.0
libtpu: 0.0.40
codegen_flags: <defaults>
</compile_context>

<pallas_src>
import numpy as np
import jax
import jax.numpy as jnp
from jax.experimental import pallas as pl
from jax.experimental.pallas import tpu as pltpu

CNN_CH = 16
OUT_PAD = 128   # FC output padded to a full lane width; sliced back in the wrapper.


# ---------------------------------------------------------------------------
# Static shape trace (mirrors TorchModel.get_fc_size for input_shape=(3,6,16,16))
# ---------------------------------------------------------------------------

def _shape_trace(c_in, d_in, h_in, w_in):
    co1 = CNN_CH
    do1, ho1, wo1 = d_in - 2, h_in - 2, w_in - 2          # Conv3d(C, 16, 3), valid
    dp1, hp1, wp1 = do1 // 2, ho1 // 2, wo1 // 2          # MaxPool3d(2, 2), floor
    co2 = 2 * CNN_CH
    do2, ho2, wo2 = dp1, hp1 - 2, wp1 - 2                 # Conv3d(16, 32, (1,3,3))
    dp2, hp2, wp2 = do2 // 2, ho2 // 2, wo2 // 2          # MaxPool3d(2, 2), floor
    fc_size = co2 * dp2 * hp2 * wp2
    return dict(co1=co1, do1=do1, ho1=ho1, wo1=wo1, dp1=dp1, hp1=hp1, wp1=wp1,
                co2=co2, do2=do2, ho2=ho2, wo2=wo2, dp2=dp2, hp2=hp2, wp2=wp2,
                fc_size=fc_size)


# ---------------------------------------------------------------------------
# Host-side weight preprocessing
# ---------------------------------------------------------------------------

def _build_t1(w1, w_in):
    """Conv1 Toeplitz with the kd taps and the (W, Cin) contraction folded into K.

    w1: (kd, kh, kw, cin, cout) DHWIO.  Returns (kh, kd*w_in*cin, wo1*cout) with
    T1[dy, dz*w_in*cin + wi*cin + ci, ow*cout + co] = w1[dz, dy, wi-ow, ci, co].
    """
    kd, kh, kw, cin, cout = w1.shape
    wo = w_in - kw + 1
    wc = w_in * cin
    t = np.zeros((kh, kd * wc, wo * cout), np.float32)
    for dy in range(kh):
        for dz in range(kd):
            for ow in range(wo):
                for dx in range(kw):
                    wi = ow + dx
                    t[dy, dz * wc + wi * cin: dz * wc + (wi + 1) * cin,
                      ow * cout:(ow + 1) * cout] = w1[dz, dy, dx]
    return t


def _build_t2(w2, wo1):
    """Conv2 Toeplitz over the pool1 W-pair-max row (width (wo1-1)*cin).

    Rows belonging to odd W-groups are zero: the pool1 even-group selection is done
    for free by the MXU instead of lane shuffles in the kernel.
    """
    _, kh, kw, cin, cout = w2.shape          # (1, 3, 3, 16, 32)
    ngrp = wo1 - 1                           # W-pair groups kept at full width
    wp1 = wo1 // 2
    wo2 = wp1 - kw + 1
    t = np.zeros((kh, ngrp * cin, wo2 * cout), np.float32)
    for dy in range(kh):
        for pw in range(wp1):
            ow = 2 * pw                      # only even groups carry pooled data
            for ow2 in range(wo2):
                dx = pw - ow2
                if 0 <= dx < kw:
                    t[dy, ow * cin:(ow + 1) * cin,
                      ow2 * cout:(ow2 + 1) * cout] = w2[0, dy, dx]
    return t


def _build_wfc(wfc, s, out_dim, out_pad):
    """Pack the FC weight for the kernel's pooled feature row.

    Kernel FC LHS = concat over ph2 of md[4*ph2, :] where the md lane layout is
    (ow2, c) and only even ow2 groups carry pooled data (odd groups -> zero rows).
    The PyTorch NCDHW flatten order is folded into the row permutation here.
    """
    co2, wo2, dp2, hp2, wp2 = s["co2"], s["wo2"], s["dp2"], s["hp2"], s["wp2"]
    mw_w = (wo2 - 1) * co2                   # lane width of the pool2 W-pair row
    pack = np.zeros((hp2 * mw_w, out_pad), np.float32)
    for ph2 in range(hp2):
        for ow2 in range(wo2 - 1):
            if ow2 % 2:
                continue
            pw2 = ow2 // 2
            if pw2 >= wp2:
                continue
            for c in range(co2):
                f_pt = ((c * dp2 + 0) * hp2 + ph2) * wp2 + pw2   # PyTorch NCDHW flatten (dp2 == 1)
                pack[ph2 * mw_w + ow2 * co2 + c, :out_dim] = wfc[f_pt]
    return pack


def prepare_params(params, *, c_in, d_in, h_in, w_in, out_dim, out_pad=OUT_PAD):
    s = _shape_trace(c_in, d_in, h_in, w_in)
    t1 = _build_t1(np.asarray(params["w1"], np.float32), w_in)            # (3, 3*W*C, WO1*CO1)
    t2 = _build_t2(np.asarray(params["w2"], np.float32), s["wo1"])        # (3, (WO1-1)*CO1, WO2*CO2)
    b1t = np.tile(np.asarray(params["b1"], np.float32).reshape(-1), s["wo1"]).reshape(1, -1)
    b2t = np.tile(np.asarray(params["b2"], np.float32).reshape(-1), s["wo2"]).reshape(1, -1)
    wfc = _build_wfc(np.asarray(params["wfc"], np.float32), s, out_dim, out_pad)
    bfc = np.pad(np.asarray(params["bfc"], np.float32).reshape(1, -1),
                 ((0, 0), (0, out_pad - out_dim)))
    # Matmul operands in bf16 (native MXU rate); biases stay f32 (f32 accumulate + add).
    return {"w1t": jnp.asarray(t1, jnp.bfloat16), "b1t": jnp.asarray(b1t),
            "w2t": jnp.asarray(t2, jnp.bfloat16), "b2t": jnp.asarray(b2t),
            "wfc": jnp.asarray(wfc, jnp.bfloat16), "bfc": jnp.asarray(bfc)}


# ---------------------------------------------------------------------------
# Fused forward kernel
# ---------------------------------------------------------------------------

def make_forward(n, c_in, d_in, h_in, w_in, out_dim, out_pad=OUT_PAD):
    s = _shape_trace(c_in, d_in, h_in, w_in)
    CO1, DO1, HO1, WO1 = s["co1"], s["do1"], s["ho1"], s["wo1"]
    DP1, HP1 = s["dp1"], s["hp1"]
    CO2, HO2, WO2 = s["co2"], s["ho2"], s["wo2"]
    DP2, HP2 = s["dp2"], s["hp2"]
    KD1, KH1, KH2 = 3, 3, 3

    WC = w_in * c_in                 # input row width (lane axis)
    K1 = KD1 * WC                    # conv1 contraction (kd folded in)            = 144
    H1W = WO1 * CO1                  # conv1 output row width                      = 224
    K2 = (WO1 - 1) * CO1             # conv2 contraction (odd W-groups zeroed)     = 208
    H2W = WO2 * CO2                  # conv2 output row width                      = 160
    MW2 = (WO2 - 1) * CO2            # pool2 W-pair row width (per-ph2 FC chunk)   = 128
    FCK = HP2 * MW2                  # FC contraction length                       = 256

    R1 = (DO1 - 1) * h_in + HO1      # conv1 rows in the flattened (D*H) row space = 62
    RM3 = R1 - 1 - h_in              # rows after the H-pair and D-pair maxima     = 45
    R2 = RM3 - 2 * (KH2 - 1)         # conv2 rows computed in the same row space   = 41
    DOFF = 2 * h_in                  # row pitch of one pool1-depth block          = 32

    assert DP2 == 1 and s["do2"] == 2, "kernel specialised to a single pool2 depth pair"
    assert R2 - 1 >= (DP1 - 1) * DOFF + 2 * (HO2 - 1)      # every conv2 row we use exists
    assert R1 + KH1 - 1 <= DO1 * h_in                      # conv1 LHS slices stay in range

    def kernel(x_ref, w1_ref, b1_ref, w2_ref, b2_ref, wfc_ref, bfc_ref, o_ref):
        # ---- conv1: kd folded into K, output-depth slices stacked into M -------------
        # lhs[od*h_in + h, dz*WC + (w*c_in + c)] = x[od+dz, h, w, c]
        lhs = jnp.concatenate(
            [jnp.concatenate([x_ref[0, od + dz, :, :] for dz in range(KD1)], axis=-1)
             for od in range(DO1)], axis=0).astype(jnp.bfloat16)          # (DO1*h_in, K1)
        acc1 = jnp.zeros((R1, H1W), jnp.float32)
        for dy in range(KH1):                                             # 3 MXU matmuls
            acc1 = acc1 + jnp.dot(lhs[dy:dy + R1, :], w1_ref[dy],
                                  preferred_element_type=jnp.float32)
        c1 = acc1 + b1_ref[...]            # (R1, H1W); row od*h_in+oh valid for oh < HO1

        # ---- pool1: shifted-slice maxima; even-row/-group selection deferred to T2 ---
        m = jnp.maximum(c1[:, :K2], c1[:, CO1:])               # W pairs      (R1,   K2)
        m = jnp.maximum(m[:R1 - 1, :], m[1:, :])               # H pairs      (R1-1, K2)
        m = jnp.maximum(m[:RM3, :], m[h_in:h_in + RM3, :])     # D pairs      (RM3,  K2)
        m = m.astype(jnp.bfloat16)

        # ---- conv2 (1,3,3): 3 MXU matmuls in the same flattened row space ------------
        acc2 = jnp.zeros((R2, H2W), jnp.float32)
        for dy in range(KH2):
            acc2 = acc2 + jnp.dot(m[2 * dy:2 * dy + R2, :], w2_ref[dy],
                                  preferred_element_type=jnp.float32)
        c2 = acc2 + b2_ref[...]            # (R2, H2W); row pd*DOFF + 2*oh2 is valid

        # ---- pool2: shifted-slice maxima; selection deferred to the packed FC weight -
        mw = jnp.maximum(c2[:, :MW2], c2[:, CO2:])             # W pairs      (R2,   MW2)
        mh = jnp.maximum(mw[:R2 - 2, :], mw[2:, :])            # H pairs      (R2-2, MW2)
        nr = 4 * (HP2 - 1) + 1
        md = jnp.maximum(mh[:nr, :], mh[DOFF:DOFF + nr, :])    # D pair       (nr,   MW2)

        # ---- fc: one (1, FCK) x (FCK, out_pad) MXU matmul ----------------------------
        feat = jnp.concatenate([md[4 * ph2:4 * ph2 + 1, :] for ph2 in range(HP2)],
                               axis=-1).astype(jnp.bfloat16)              # (1, FCK)
        o_ref[0] = jnp.dot(feat, wfc_ref[...],
                           preferred_element_type=jnp.float32) + bfc_ref[...]

    fused = pl.pallas_call(
        kernel,
        out_shape=jax.ShapeDtypeStruct((n, 1, out_pad), jnp.float32),
        grid=(n,),
        in_specs=[
            pl.BlockSpec((1, d_in, h_in, WC), lambda i: (i, 0, 0, 0)),
            pl.BlockSpec((KH1, K1, H1W), lambda i: (0, 0, 0)),   # grid-invariant weights
            pl.BlockSpec((1, H1W), lambda i: (0, 0)),
            pl.BlockSpec((KH2, K2, H2W), lambda i: (0, 0, 0)),
            pl.BlockSpec((1, H2W), lambda i: (0, 0)),
            pl.BlockSpec((FCK, out_pad), lambda i: (0, 0)),
            pl.BlockSpec((1, out_pad), lambda i: (0, 0)),
        ],
        out_specs=pl.BlockSpec((1, 1, out_pad), lambda i: (i, 0, 0)),
        compiler_params=pltpu.CompilerParams(dimension_semantics=("parallel",)),
    )

    @jax.jit
    def forward(x_ncdhw, kp):
        # NCDHW -> NDHWC -> (N, D, H, W*C): channels folded into the lane axis.
        xw = jnp.transpose(x_ncdhw, (0, 2, 3, 4, 1)).reshape(n, d_in, h_in, WC)
        out = fused(xw, kp["w1t"], kp["b1t"], kp["w2t"], kp["b2t"],
                    kp["wfc"], kp["bfc"])
        return out[:, 0, :out_dim]

    return forward


# ---------------------------------------------------------------------------
# Pure-JAX reference (no Pallas) for numerical validation
# ---------------------------------------------------------------------------

def reference_forward(x_ncdhw, params):
    hi = jax.lax.Precision.HIGHEST
    x = jnp.transpose(x_ncdhw, (0, 2, 3, 4, 1))
    dn = ("NDHWC", "DHWIO", "NDHWC")
    x = jax.lax.conv_general_dilated(x, params["w1"], (1, 1, 1), "VALID",
                                     dimension_numbers=dn, precision=hi) + params["b1"][0]
    x = jax.lax.reduce_window(x, -jnp.inf, jax.lax.max,
                              (1, 2, 2, 2, 1), (1, 2, 2, 2, 1), "VALID")
    x = jax.lax.conv_general_dilated(x, params["w2"], (1, 1, 1), "VALID",
                                     dimension_numbers=dn, precision=hi) + params["b2"][0]
    x = jax.lax.reduce_window(x, -jnp.inf, jax.lax.max,
                              (1, 2, 2, 2, 1), (1, 2, 2, 2, 1), "VALID")
    x = jnp.transpose(x, (0, 4, 1, 2, 3)).reshape(x.shape[0], -1)
    return jnp.dot(x, params["wfc"], precision=hi) + params["bfc"]


# ---------------------------------------------------------------------------
# Main
# ---------------------------------------------------------------------------

if __name__ == "__main__":
    N, C, D, H, W = 2, 3, 6, 16, 16      # input_shape = (C, D, H, W), batch = 2
    OUT_DIM = 10

    s = _shape_trace(C, D, H, W)
    fc_size = s["fc_size"]               # = 128 for this input shape

    key = jax.random.PRNGKey(0)
    kx, k1, k2, k3, k4, k5, k6 = jax.random.split(key, 7)
    x = jax.random.normal(kx, (N, C, D, H, W), jnp.float32)

    params = {
        "w1": 0.1 * jax.random.normal(k1, (3, 3, 3, C, CNN_CH), jnp.float32),
        "b1": 0.1 * jax.random.normal(k2, (1, CNN_CH), jnp.float32),
        "w2": 0.1 * jax.random.normal(k3, (1, 3, 3, CNN_CH, 2 * CNN_CH), jnp.float32),
        "b2": 0.1 * jax.random.normal(k4, (1, 2 * CNN_CH), jnp.float32),
        "wfc": 0.1 * jax.random.normal(k5, (fc_size, OUT_DIM), jnp.float32),
        "bfc": 0.1 * jax.random.normal(k6, (1, OUT_DIM), jnp.float32),
    }

    kparams = prepare_params(params, c_in=C, d_in=D, h_in=H, w_in=W, out_dim=OUT_DIM)
    forward = make_forward(N, C, D, H, W, OUT_DIM)

    out = jax.block_until_ready(forward(x, kparams))
    ref = jax.block_until_ready(reference_forward(x, params))

    assert out.shape == (N, OUT_DIM), out.shape
    # Kernel feeds the MXU bf16 operands (f32 accumulation); the reference is full f32,
    # so allow a bf16-input-sized mismatch.
    assert jnp.allclose(out, ref, rtol=3e-2, atol=3e-2), (out, ref)
    print("KERNEL_OK")
</pallas_src>

<mosaic_0001>
module attributes {stable_mosaic.version = 11 : i64} {
  func.func @kernel(%arg0: i32, %arg1: memref<1x6x16x48xf32, #tpu.memory_space<vmem>>, %arg2: memref<3x144x224xbf16, #tpu.memory_space<vmem>>, %arg3: memref<1x224xf32, #tpu.memory_space<vmem>>, %arg4: memref<3x208x160xbf16, #tpu.memory_space<vmem>>, %arg5: memref<1x160xf32, #tpu.memory_space<vmem>>, %arg6: memref<256x128xbf16, #tpu.memory_space<vmem>>, %arg7: memref<1x128xf32, #tpu.memory_space<vmem>>, %arg8: memref<1x1x128xf32, #tpu.memory_space<vmem>>) attributes {dimension_semantics = [#tpu.dimension_semantics<parallel>], iteration_bounds = array<i64: 2>, scalar_prefetch = 0 : i64, scratch_operands = 0 : i64, tpu.core_type = #tpu.core_type<tc>, window_params = [{transform_indices = @transform_0, window_bounds = array<i64: 1, 6, 16, 48>}, {pipeline_mode = #tpu.pipeline_mode<synchronous>, transform_indices = @transform_1, window_bounds = array<i64: 3, 144, 224>}, {pipeline_mode = #tpu.pipeline_mode<synchronous>, transform_indices = @transform_2, window_bounds = array<i64: 1, 224>}, {pipeline_mode = #tpu.pipeline_mode<synchronous>, transform_indices = @transform_3, window_bounds = array<i64: 3, 208, 160>}, {pipeline_mode = #tpu.pipeline_mode<synchronous>, transform_indices = @transform_4, window_bounds = array<i64: 1, 160>}, {pipeline_mode = #tpu.pipeline_mode<synchronous>, transform_indices = @transform_5, window_bounds = array<i64: 256, 128>}, {pipeline_mode = #tpu.pipeline_mode<synchronous>, transform_indices = @transform_6, window_bounds = array<i64: 1, 128>}, {transform_indices = @transform_7, window_bounds = array<i64: 1, 1, 128>}]} {
    %c0 = arith.constant 0 : index
    %c0_0 = arith.constant 0 : index
    %c0_1 = arith.constant 0 : index
    %c0_2 = arith.constant 0 : index
    %0 = vector.load %arg1[%c0, %c0_0, %c0_1, %c0_2] : memref<1x6x16x48xf32, #tpu.memory_space<vmem>>, vector<1x1x16x48xf32>
    %1 = vector.shape_cast %0 : vector<1x1x16x48xf32> to vector<16x48xf32>
    %c0_3 = arith.constant 0 : index
    %c1 = arith.constant 1 : index
    %c0_4 = arith.constant 0 : index
    %c0_5 = arith.constant 0 : index
    %2 = vector.load %arg1[%c0_3, %c1, %c0_4, %c0_5] : memref<1x6x16x48xf32, #tpu.memory_space<vmem>>, vector<1x1x16x48xf32>
    %3 = vector.shape_cast %2 : vector<1x1x16x48xf32> to vector<16x48xf32>
    %c0_6 = arith.constant 0 : index
    %c2 = arith.constant 2 : index
    %c0_7 = arith.constant 0 : index
    %c0_8 = arith.constant 0 : index
    %4 = vector.load %arg1[%c0_6, %c2, %c0_7, %c0_8] : memref<1x6x16x48xf32, #tpu.memory_space<vmem>>, vector<1x1x16x48xf32>
    %5 = vector.shape_cast %4 : vector<1x1x16x48xf32> to vector<16x48xf32>
    %6 = tpu.concatenate %1, %3, %5 in 1 : vector<16x48xf32>, vector<16x48xf32>, vector<16x48xf32> -> vector<16x144xf32>
    %c0_9 = arith.constant 0 : index
    %c1_10 = arith.constant 1 : index
    %c0_11 = arith.constant 0 : index
    %c0_12 = arith.constant 0 : index
    %7 = vector.load %arg1[%c0_9, %c1_10, %c0_11, %c0_12] : memref<1x6x16x48xf32, #tpu.memory_space<vmem>>, vector<1x1x16x48xf32>
    %8 = vector.shape_cast %7 : vector<1x1x16x48xf32> to vector<16x48xf32>
    %c0_13 = arith.constant 0 : index
    %c2_14 = arith.constant 2 : index
    %c0_15 = arith.constant 0 : index
    %c0_16 = arith.constant 0 : index
    %9 = vector.load %arg1[%c0_13, %c2_14, %c0_15, %c0_16] : memref<1x6x16x48xf32, #tpu.memory_space<vmem>>, vector<1x1x16x48xf32>
    %10 = vector.shape_cast %9 : vector<1x1x16x48xf32> to vector<16x48xf32>
    %c0_17 = arith.constant 0 : index
    %c3 = arith.constant 3 : index
    %c0_18 = arith.constant 0 : index
    %c0_19 = arith.constant 0 : index
    %11 = vector.load %arg1[%c0_17, %c3, %c0_18, %c0_19] : memref<1x6x16x48xf32, #tpu.memory_space<vmem>>, vector<1x1x16x48xf32>
    %12 = vector.shape_cast %11 : vector<1x1x16x48xf32> to vector<16x48xf32>
    %13 = tpu.concatenate %8, %10, %12 in 1 : vector<16x48xf32>, vector<16x48xf32>, vector<16x48xf32> -> vector<16x144xf32>
    %c0_20 = arith.constant 0 : index
    %c2_21 = arith.constant 2 : index
    %c0_22 = arith.constant 0 : index
    %c0_23 = arith.constant 0 : index
    %14 = vector.load %arg1[%c0_20, %c2_21, %c0_22, %c0_23] : memref<1x6x16x48xf32, #tpu.memory_space<vmem>>, vector<1x1x16x48xf32>
    %15 = vector.shape_cast %14 : vector<1x1x16x48xf32> to vector<16x48xf32>
    %c0_24 = arith.constant 0 : index
    %c3_25 = arith.constant 3 : index
    %c0_26 = arith.constant 0 : index
    %c0_27 = arith.constant 0 : index
    %16 = vector.load %arg1[%c0_24, %c3_25, %c0_26, %c0_27] : memref<1x6x16x48xf32, #tpu.memory_space<vmem>>, vector<1x1x16x48xf32>
    %17 = vector.shape_cast %16 : vector<1x1x16x48xf32> to vector<16x48xf32>
    %c0_28 = arith.constant 0 : index
    %c4 = arith.constant 4 : index
    %c0_29 = arith.constant 0 : index
    %c0_30 = arith.constant 0 : index
    %18 = vector.load %arg1[%c0_28, %c4, %c0_29, %c0_30] : memref<1x6x16x48xf32, #tpu.memory_space<vmem>>, vector<1x1x16x48xf32>
    %19 = vector.shape_cast %18 : vector<1x1x16x48xf32> to vector<16x48xf32>
    %20 = tpu.concatenate %15, %17, %19 in 1 : vector<16x48xf32>, vector<16x48xf32>, vector<16x48xf32> -> vector<16x144xf32>
    %c0_31 = arith.constant 0 : index
    %c3_32 = arith.constant 3 : index
    %c0_33 = arith.constant 0 : index
    %c0_34 = arith.constant 0 : index
    %21 = vector.load %arg1[%c0_31, %c3_32, %c0_33, %c0_34] : memref<1x6x16x48xf32, #tpu.memory_space<vmem>>, vector<1x1x16x48xf32>
    %22 = vector.shape_cast %21 : vector<1x1x16x48xf32> to vector<16x48xf32>
    %c0_35 = arith.constant 0 : index
    %c4_36 = arith.constant 4 : index
    %c0_37 = arith.constant 0 : index
    %c0_38 = arith.constant 0 : index
    %23 = vector.load %arg1[%c0_35, %c4_36, %c0_37, %c0_38] : memref<1x6x16x48xf32, #tpu.memory_space<vmem>>, vector<1x1x16x48xf32>
    %24 = vector.shape_cast %23 : vector<1x1x16x48xf32> to vector<16x48xf32>
    %c0_39 = arith.constant 0 : index
    %c5 = arith.constant 5 : index
    %c0_40 = arith.constant 0 : index
    %c0_41 = arith.constant 0 : index
    %25 = vector.load %arg1[%c0_39, %c5, %c0_40, %c0_41] : memref<1x6x16x48xf32, #tpu.memory_space<vmem>>, vector<1x1x16x48xf32>
    %26 = vector.shape_cast %25 : vector<1x1x16x48xf32> to vector<16x48xf32>
    %27 = tpu.concatenate %22, %24, %26 in 1 : vector<16x48xf32>, vector<16x48xf32>, vector<16x48xf32> -> vector<16x144xf32>
    %28 = tpu.concatenate %6, %13, %20, %27 in 0 : vector<16x144xf32>, vector<16x144xf32>, vector<16x144xf32>, vector<16x144xf32> -> vector<64x144xf32>
    %29 = arith.truncf %28 : vector<64x144xf32> to vector<64x144xbf16>
    %cst = arith.constant 0.000000e+00 : f32
    %30 = vector.broadcast %cst : f32 to vector<62x224xf32>
    %31 = vector.extract_strided_slice %29 {offsets = [0, 0], sizes = [62, 144], strides = [1, 1]} : vector<64x144xbf16> to vector<62x144xbf16>
    %c0_42 = arith.constant 0 : index
    %c0_43 = arith.constant 0 : index
    %c0_44 = arith.constant 0 : index
    %32 = vector.load %arg2[%c0_42, %c0_43, %c0_44] : memref<3x144x224xbf16, #tpu.memory_space<vmem>>, vector<1x144x224xbf16>
    %33 = vector.shape_cast %32 : vector<1x144x224xbf16> to vector<144x224xbf16>
    %cst_45 = arith.constant dense<0.000000e+00> : vector<62x224xf32>
    %34 = tpu.matmul %31, %33, %cst_45 {dimension_numbers = #tpu.dot_dimension_numbers<[1], [0], [0], [1], [0, 0, 1, 1], [], []>} : vector<62x144xbf16>, vector<144x224xbf16>, vector<62x224xf32> -> vector<62x224xf32>
    %35 = arith.addf %30, %34 : vector<62x224xf32>
    %36 = vector.extract_strided_slice %29 {offsets = [1, 0], sizes = [62, 144], strides = [1, 1]} : vector<64x144xbf16> to vector<62x144xbf16>
    %c1_46 = arith.constant 1 : index
    %c0_47 = arith.constant 0 : index
    %c0_48 = arith.constant 0 : index
    %37 = vector.load %arg2[%c1_46, %c0_47, %c0_48] : memref<3x144x224xbf16, #tpu.memory_space<vmem>>, vector<1x144x224xbf16>
    %38 = vector.shape_cast %37 : vector<1x144x224xbf16> to vector<144x224xbf16>
    %cst_49 = arith.constant dense<0.000000e+00> : vector<62x224xf32>
    %39 = tpu.matmul %36, %38, %cst_49 {dimension_numbers = #tpu.dot_dimension_numbers<[1], [0], [0], [1], [0, 0, 1, 1], [], []>} : vector<62x144xbf16>, vector<144x224xbf16>, vector<62x224xf32> -> vector<62x224xf32>
    %40 = arith.addf %35, %39 : vector<62x224xf32>
    %41 = vector.extract_strided_slice %29 {offsets = [2, 0], sizes = [62, 144], strides = [1, 1]} : vector<64x144xbf16> to vector<62x144xbf16>
    %c2_50 = arith.constant 2 : index
    %c0_51 = arith.constant 0 : index
    %c0_52 = arith.constant 0 : index
    %42 = vector.load %arg2[%c2_50, %c0_51, %c0_52] : memref<3x144x224xbf16, #tpu.memory_space<vmem>>, vector<1x144x224xbf16>
    %43 = vector.shape_cast %42 : vector<1x144x224xbf16> to vector<144x224xbf16>
    %cst_53 = arith.constant dense<0.000000e+00> : vector<62x224xf32>
    %44 = tpu.matmul %41, %43, %cst_53 {dimension_numbers = #tpu.dot_dimension_numbers<[1], [0], [0], [1], [0, 0, 1, 1], [], []>} : vector<62x144xbf16>, vector<144x224xbf16>, vector<62x224xf32> -> vector<62x224xf32>
    %45 = arith.addf %40, %44 : vector<62x224xf32>
    %c0_54 = arith.constant 0 : index
    %c0_55 = arith.constant 0 : index
    %46 = vector.load %arg3[%c0_54, %c0_55] : memref<1x224xf32, #tpu.memory_space<vmem>>, vector<1x224xf32>
    %47 = vector.broadcast %46 : vector<1x224xf32> to vector<62x224xf32>
    %48 = arith.addf %45, %47 : vector<62x224xf32>
    %49 = vector.extract_strided_slice %48 {offsets = [0, 0], sizes = [62, 208], strides = [1, 1]} : vector<62x224xf32> to vector<62x208xf32>
    %50 = vector.extract_strided_slice %48 {offsets = [0, 16], sizes = [62, 208], strides = [1, 1]} : vector<62x224xf32> to vector<62x208xf32>
    %51 = arith.maximumf %49, %50 : vector<62x208xf32>
    %52 = vector.extract_strided_slice %51 {offsets = [0, 0], sizes = [61, 208], strides = [1, 1]} : vector<62x208xf32> to vector<61x208xf32>
    %53 = vector.extract_strided_slice %51 {offsets = [1, 0], sizes = [61, 208], strides = [1, 1]} : vector<62x208xf32> to vector<61x208xf32>
    %54 = arith.maximumf %52, %53 : vector<61x208xf32>
    %55 = vector.extract_strided_slice %54 {offsets = [0, 0], sizes = [45, 208], strides = [1, 1]} : vector<61x208xf32> to vector<45x208xf32>
    %56 = vector.extract_strided_slice %54 {offsets = [16, 0], sizes = [45, 208], strides = [1, 1]} : vector<61x208xf32> to vector<45x208xf32>
    %57 = arith.maximumf %55, %56 : vector<45x208xf32>
    %58 = arith.truncf %57 : vector<45x208xf32> to vector<45x208xbf16>
    %cst_56 = arith.constant 0.000000e+00 : f32
    %59 = vector.broadcast %cst_56 : f32 to vector<41x160xf32>
    %60 = vector.extract_strided_slice %58 {offsets = [0, 0], sizes = [41, 208], strides = [1, 1]} : vector<45x208xbf16> to vector<41x208xbf16>
    %c0_57 = arith.constant 0 : index
    %c0_58 = arith.constant 0 : index
    %c0_59 = arith.constant 0 : index
    %61 = vector.load %arg4[%c0_57, %c0_58, %c0_59] : memref<3x208x160xbf16, #tpu.memory_space<vmem>>, vector<1x208x160xbf16>
    %62 = vector.shape_cast %61 : vector<1x208x160xbf16> to vector<208x160xbf16>
    %cst_60 = arith.constant dense<0.000000e+00> : vector<41x160xf32>
    %63 = tpu.matmul %60, %62, %cst_60 {dimension_numbers = #tpu.dot_dimension_numbers<[1], [0], [0], [1], [0, 0, 1, 1], [], []>} : vector<41x208xbf16>, vector<208x160xbf16>, vector<41x160xf32> -> vector<41x160xf32>
    %64 = arith.addf %59, %63 : vector<41x160xf32>
    %65 = vector.extract_strided_slice %58 {offsets = [2, 0], sizes = [41, 208], strides = [1, 1]} : vector<45x208xbf16> to vector<41x208xbf16>
    %c1_61 = arith.constant 1 : index
    %c0_62 = arith.constant 0 : index
    %c0_63 = arith.constant 0 : index
    %66 = vector.load %arg4[%c1_61, %c0_62, %c0_63] : memref<3x208x160xbf16, #tpu.memory_space<vmem>>, vector<1x208x160xbf16>
    %67 = vector.shape_cast %66 : vector<1x208x160xbf16> to vector<208x160xbf16>
    %cst_64 = arith.constant dense<0.000000e+00> : vector<41x160xf32>
    %68 = tpu.matmul %65, %67, %cst_64 {dimension_numbers = #tpu.dot_dimension_numbers<[1], [0], [0], [1], [0, 0, 1, 1], [], []>} : vector<41x208xbf16>, vector<208x160xbf16>, vector<41x160xf32> -> vector<41x160xf32>
    %69 = arith.addf %64, %68 : vector<41x160xf32>
    %70 = vector.extract_strided_slice %58 {offsets = [4, 0], sizes = [41, 208], strides = [1, 1]} : vector<45x208xbf16> to vector<41x208xbf16>
    %c2_65 = arith.constant 2 : index
    %c0_66 = arith.constant 0 : index
    %c0_67 = arith.constant 0 : index
    %71 = vector.load %arg4[%c2_65, %c0_66, %c0_67] : memref<3x208x160xbf16, #tpu.memory_space<vmem>>, vector<1x208x160xbf16>
    %72 = vector.shape_cast %71 : vector<1x208x160xbf16> to vector<208x160xbf16>
    %cst_68 = arith.constant dense<0.000000e+00> : vector<41x160xf32>
    %73 = tpu.matmul %70, %72, %cst_68 {dimension_numbers = #tpu.dot_dimension_numbers<[1], [0], [0], [1], [0, 0, 1, 1], [], []>} : vector<41x208xbf16>, vector<208x160xbf16>, vector<41x160xf32> -> vector<41x160xf32>
    %74 = arith.addf %69, %73 : vector<41x160xf32>
    %c0_69 = arith.constant 0 : index
    %c0_70 = arith.constant 0 : index
    %75 = vector.load %arg5[%c0_69, %c0_70] : memref<1x160xf32, #tpu.memory_space<vmem>>, vector<1x160xf32>
    %76 = vector.broadcast %75 : vector<1x160xf32> to vector<41x160xf32>
    %77 = arith.addf %74, %76 : vector<41x160xf32>
    %78 = vector.extract_strided_slice %77 {offsets = [0, 0], sizes = [41, 128], strides = [1, 1]} : vector<41x160xf32> to vector<41x128xf32>
    %79 = vector.extract_strided_slice %77 {offsets = [0, 32], sizes = [41, 128], strides = [1, 1]} : vector<41x160xf32> to vector<41x128xf32>
    %80 = arith.maximumf %78, %79 : vector<41x128xf32>
    %81 = vector.extract_strided_slice %80 {offsets = [0, 0], sizes = [39, 128], strides = [1, 1]} : vector<41x128xf32> to vector<39x128xf32>
    %82 = vector.extract_strided_slice %80 {offsets = [2, 0], sizes = [39, 128], strides = [1, 1]} : vector<41x128xf32> to vector<39x128xf32>
    %83 = arith.maximumf %81, %82 : vector<39x128xf32>
    %84 = vector.extract_strided_slice %83 {offsets = [0, 0], sizes = [5, 128], strides = [1, 1]} : vector<39x128xf32> to vector<5x128xf32>
    %85 = vector.extract_strided_slice %83 {offsets = [32, 0], sizes = [5, 128], strides = [1, 1]} : vector<39x128xf32> to vector<5x128xf32>
    %86 = arith.maximumf %84, %85 : vector<5x128xf32>
    %87 = vector.extract_strided_slice %86 {offsets = [0, 0], sizes = [1, 128], strides = [1, 1]} : vector<5x128xf32> to vector<1x128xf32>
    %88 = vector.extract_strided_slice %86 {offsets = [4, 0], sizes = [1, 128], strides = [1, 1]} : vector<5x128xf32> to vector<1x128xf32>
    %89 = tpu.concatenate %87, %88 in 1 : vector<1x128xf32>, vector<1x128xf32> -> vector<1x256xf32>
    %90 = arith.truncf %89 : vector<1x256xf32> to vector<1x256xbf16>
    %c0_71 = arith.constant 0 : index
    %c0_72 = arith.constant 0 : index
    %91 = vector.load %arg6[%c0_71, %c0_72] : memref<256x128xbf16, #tpu.memory_space<vmem>>, vector<256x128xbf16>
    %cst_73 = arith.constant dense<0.000000e+00> : vector<1x128xf32>
    %92 = tpu.matmul %90, %91, %cst_73 {dimension_numbers = #tpu.dot_dimension_numbers<[1], [0], [0], [1], [0, 0, 1, 1], [], []>} : vector<1x256xbf16>, vector<256x128xbf16>, vector<1x128xf32> -> vector<1x128xf32>
    %c0_74 = arith.constant 0 : index
    %c0_75 = arith.constant 0 : index
    %93 = vector.load %arg7[%c0_74, %c0_75] : memref<1x128xf32, #tpu.memory_space<vmem>>, vector<1x128xf32>
    %94 = arith.addf %92, %93 : vector<1x128xf32>
    %c0_76 = arith.constant 0 : index
    %c0_77 = arith.constant 0 : index
    %c0_78 = arith.constant 0 : index
    %95 = vector.load %arg8[%c0_76, %c0_77, %c0_78] : memref<1x1x128xf32, #tpu.memory_space<vmem>>, vector<1x1x128xf32>
    %96 = vector.shape_cast %95 : vector<1x1x128xf32> to vector<1x128xf32>
    %97 = vector.shape_cast %94 : vector<1x128xf32> to vector<1x1x128xf32>
    tpu.vector_store %arg8[%c0_76, %c0_77, %c0_78], %97 {strides = array<i32>} : memref<1x1x128xf32, #tpu.memory_space<vmem>>, vector<1x1x128xf32>,
    return
  }
  func.func @transform_0(%arg0: i32) -> (i32, i32, i32, i32) {
    %c0_i32 = arith.constant 0 : i32
    %c0_i32_0 = arith.constant 0 : i32
    %c0_i32_1 = arith.constant 0 : i32
    %c0_i32_2 = arith.constant 0 : i32
    return %arg0, %c0_i32, %c0_i32_0, %c0_i32_1 : i32, i32, i32, i32
  }
  func.func @transform_1(%arg0: i32) -> (i32, i32, i32) {
    %c0_i32 = arith.constant 0 : i32
    %c0_i32_0 = arith.constant 0 : i32
    %c0_i32_1 = arith.constant 0 : i32
    %c0_i32_2 = arith.constant 0 : i32
    return %c0_i32, %c0_i32_0, %c0_i32_1 : i32, i32, i32
  }
  func.func @transform_2(%arg0: i32) -> (i32, i32) {
    %c0_i32 = arith.constant 0 : i32
    %c0_i32_0 = arith.constant 0 : i32
    %c0_i32_1 = arith.constant 0 : i32
    return %c0_i32, %c0_i32_0 : i32, i32
  }
  func.func @transform_3(%arg0: i32) -> (i32, i32, i32) {
    %c0_i32 = arith.constant 0 : i32
    %c0_i32_0 = arith.constant 0 : i32
    %c0_i32_1 = arith.constant 0 : i32
    %c0_i32_2 = arith.constant 0 : i32
    return %c0_i32, %c0_i32_0, %c0_i32_1 : i32, i32, i32
  }
  func.func @transform_4(%arg0: i32) -> (i32, i32) {
    %c0_i32 = arith.constant 0 : i32
    %c0_i32_0 = arith.constant 0 : i32
    %c0_i32_1 = arith.constant 0 : i32
    return %c0_i32, %c0_i32_0 : i32, i32
  }
  func.func @transform_5(%arg0: i32) -> (i32, i32) {
    %c0_i32 = arith.constant 0 : i32
    %c0_i32_0 = arith.constant 0 : i32
    %c0_i32_1 = arith.constant 0 : i32
    return %c0_i32, %c0_i32_0 : i32, i32
  }
  func.func @transform_6(%arg0: i32) -> (i32, i32) {
    %c0_i32 = arith.constant 0 : i32
    %c0_i32_0 = arith.constant 0 : i32
    %c0_i32_1 = arith.constant 0 : i32
    return %c0_i32, %c0_i32_0 : i32, i32
  }
  func.func @transform_7(%arg0: i32) -> (i32, i32, i32) {
    %c0_i32 = arith.constant 0 : i32
    %c0_i32_0 = arith.constant 0 : i32
    %c0_i32_1 = arith.constant 0 : i32
    return %arg0, %c0_i32, %c0_i32_0 : i32, i32, i32
  }
}

</mosaic_0001>

<llo_original>
// kernel: forward.1
$region0: #{forward.1}
  #allocation0 [shape = 'u32[]', space=smem, size = 0x4, offset = 0x4, fixed_abs, tag = 'smem constant byte address 0x4 - core index']
  #allocation1 [shape = 'u32[144,128]{1,0:T(1,128)}', space=vmem, size = 0x12000, scoped, tag = 'internal scratch']
  %s0 = inlined_call_operand.vmem [shape: f32[2,6,16,48], index: 0, kind: input, shape index: {}]
  %s1 = inlined_call_operand.vmem [shape: bf16[3,144,224], index: 1, kind: input, shape index: {}]
  %s2 = inlined_call_operand.vmem [shape: f32[1,224], index: 2, kind: input, shape index: {}]
  %s3 = inlined_call_operand.vmem [shape: bf16[3,208,160], index: 3, kind: input, shape index: {}]
  %s4 = inlined_call_operand.vmem [shape: f32[1,160], index: 4, kind: input, shape index: {}]
  %s5 = inlined_call_operand.vmem [shape: bf16[256,128], index: 5, kind: input, shape index: {}]
  %s6 = inlined_call_operand.vmem [shape: f32[1,128], index: 6, kind: input, shape index: {}]
  %s7 = inlined_call_operand.hbm [shape: f32[2,1,128], index: 7, kind: output, shape index: {}]
  %s8 = sld [smem:[#allocation0]]
  $region61: #{forward.1} parent=0
    _
  %s10 = ssub.s32 1, %s8
  %s11 = scalar_select 0, %s10, %s8
  $region1: #{forward.1} parent=0
    #allocation2 [shape = 'u8[1024]{0}', space=vmem, size = 0x400, scoped, tag = 'output window, operand 0']
    #allocation3 [shape = 's32[2]{0}', space=sflag, size = 0x8, scoped, tag = 'scoped memory for forward.1']
    %12 = vsyncpa [#allocation3], 0
    %s13 = scalar_lea.sflag [#allocation3], 1
    %14 = vsyncpa %s13, 0
    loop: start=0, step=1, limit=4
    $region2: #{forward.1} parent=1 // loop_pre_header
      _
    $region3: #{forward.1} parent=1 // loop_header
      %s16 = sphi 0, %s20
      %p17 = scmp.ge.s32.totalorder %s16, 4
      %s26 = sphi 0, %s28
      %s29 = sphi 0, %s26
      %s30 = sphi 0, %s29
      %s46 = sphi 0, %s30
      %s50 = sphi 0, %s50
      %s52 = sphi 0, %s50
      %s53 = sphi 0, %s52
      %s67 = sphi 0, %s53
      %s71 = sphi 0, %s71
      %s73 = sphi 0, %s71
      %s74 = sphi 0, %s73
      %s88 = sphi 0, %s74
      %s92 = sphi 0, %s92
      %s94 = sphi 0, %s92
      %s95 = sphi 0, %s94
      %s109 = sphi 0, %s95
      %s113 = sphi 0, %s113
      %s115 = sphi 0, %s113
      %s116 = sphi 0, %s115
      %s130 = sphi 0, %s116
      %s134 = sphi 0, %s134
      %s136 = sphi 0, %s134
      %s137 = sphi 0, %s136
      %s151 = sphi 0, %s137
      %s155 = sphi 0, %s155
      %s157 = sphi 0, %s155
      %s158 = sphi 0, %s157
      %s172 = sphi 0, %s158
      %s178 = sphi 0, %s180
      %s181 = sphi 0, %s178
      %s182 = sphi 0, %s181
      %s198 = sphi 0, %s182
    $region4: #{forward.1} parent=1 // loop_header_branch
      %19 = sbr.rel (%p17) target = $region8
    $region5: #{forward.1} parent=1 // loop_body
      %s21 = ssub.s32 %s16, 1
      %s22 = ssub.s32 %s16, 2
      %s23 = sadd.s32 %s16, 1
      %s24 = ssub.s32 %s16, %s23
      %p25 = scmp.eq.s32.totalorder %s24, 0
      %s27 = sadd.s32 %s26, 1
      %s28 = scalar_select %p25, %s26, %s27
      %p31 = pneg %p25
      %p32 = scmp.eq.s32.totalorder %s16, 1
      %p33 = por %p31, %p32
      %p34 = scmp.ne.s32.totalorder %s26, %s29
      %p35 = scmp.eq.s32.totalorder %s16, 0
      %p36 = por %p34, %p35
      %p37 = scmp.ne.s32.totalorder %s26, %s29
      %p38 = scmp.eq.s32.totalorder %s21, 1
      %p39 = por %p37, %p38
      %p40 = scmp.ne.s32.totalorder %s29, %s30
      %p41 = scmp.eq.s32.totalorder %s21, 0
      %p42 = por %p40, %p41
      %p43 = scmp.ne.s32.totalorder %s29, %s30
      %p44 = scmp.eq.s32.totalorder %s22, 1
      %p45 = por %p43, %p44
      %p47 = scmp.ne.s32.totalorder %s30, %s46
      %p48 = scmp.eq.s32.totalorder %s22, 0
      %p49 = por %p47, %p48
      %s51 = sadd.s32 %s50, 1
      %p54 = scmp.eq.s32.totalorder %s16, 1
      %p55 = scmp.ne.s32.totalorder %s50, %s52
      %p56 = scmp.eq.s32.totalorder %s16, 0
      %p57 = por %p55, %p56
      %p58 = scmp.ne.s32.totalorder %s50, %s52
      %p59 = scmp.eq.s32.totalorder %s21, 1
      %p60 = por %p58, %p59
      %p61 = scmp.ne.s32.totalorder %s52, %s53
      %p62 = scmp.eq.s32.totalorder %s21, 0
      %p63 = por %p61, %p62
      %p64 = scmp.ne.s32.totalorder %s52, %s53
      %p65 = scmp.eq.s32.totalorder %s22, 1
      %p66 = por %p64, %p65
      %p68 = scmp.ne.s32.totalorder %s53, %s67
      %p69 = scmp.eq.s32.totalorder %s22, 0
      %p70 = por %p68, %p69
      %s72 = sadd.s32 %s71, 1
      %p75 = scmp.eq.s32.totalorder %s16, 1
      %p76 = scmp.ne.s32.totalorder %s71, %s73
      %p77 = scmp.eq.s32.totalorder %s16, 0
      %p78 = por %p76, %p77
      %p79 = scmp.ne.s32.totalorder %s71, %s73
      %p80 = scmp.eq.s32.totalorder %s21, 1
      %p81 = por %p79, %p80
      %p82 = scmp.ne.s32.totalorder %s73, %s74
      %p83 = scmp.eq.s32.totalorder %s21, 0
      %p84 = por %p82, %p83
      %p85 = scmp.ne.s32.totalorder %s73, %s74
      %p86 = scmp.eq.s32.totalorder %s22, 1
      %p87 = por %p85, %p86
      %p89 = scmp.ne.s32.totalorder %s74, %s88
      %p90 = scmp.eq.s32.totalorder %s22, 0
      %p91 = por %p89, %p90
      %s93 = sadd.s32 %s92, 1
      %p96 = scmp.eq.s32.totalorder %s16, 1
      %p97 = scmp.ne.s32.totalorder %s92, %s94
      %p98 = scmp.eq.s32.totalorder %s16, 0
      %p99 = por %p97, %p98
      %p100 = scmp.ne.s32.totalorder %s92, %s94
      %p101 = scmp.eq.s32.totalorder %s21, 1
      %p102 = por %p100, %p101
      %p103 = scmp.ne.s32.totalorder %s94, %s95
      %p104 = scmp.eq.s32.totalorder %s21, 0
      %p105 = por %p103, %p104
      %p106 = scmp.ne.s32.totalorder %s94, %s95
      %p107 = scmp.eq.s32.totalorder %s22, 1
      %p108 = por %p106, %p107
      %p110 = scmp.ne.s32.totalorder %s95, %s109
      %p111 = scmp.eq.s32.totalorder %s22, 0
      %p112 = por %p110, %p111
      %s114 = sadd.s32 %s113, 1
      %p117 = scmp.eq.s32.totalorder %s16, 1
      %p118 = scmp.ne.s32.totalorder %s113, %s115
      %p119 = scmp.eq.s32.totalorder %s16, 0
      %p120 = por %p118, %p119
      %p121 = scmp.ne.s32.totalorder %s113, %s115
      %p122 = scmp.eq.s32.totalorder %s21, 1
      %p123 = por %p121, %p122
      %p124 = scmp.ne.s32.totalorder %s115, %s116
      %p125 = scmp.eq.s32.totalorder %s21, 0
      %p126 = por %p124, %p125
      %p127 = scmp.ne.s32.totalorder %s115, %s116
      %p128 = scmp.eq.s32.totalorder %s22, 1
      %p129 = por %p127, %p128
      %p131 = scmp.ne.s32.totalorder %s116, %s130
      %p132 = scmp.eq.s32.totalorder %s22, 0
      %p133 = por %p131, %p132
      %s135 = sadd.s32 %s134, 1
      %p138 = scmp.eq.s32.totalorder %s16, 1
      %p139 = scmp.ne.s32.totalorder %s134, %s136
      %p140 = scmp.eq.s32.totalorder %s16, 0
      %p141 = por %p139, %p140
      %p142 = scmp.ne.s32.totalorder %s134, %s136
      %p143 = scmp.eq.s32.totalorder %s21, 1
      %p144 = por %p142, %p143
      %p145 = scmp.ne.s32.totalorder %s136, %s137
      %p146 = scmp.eq.s32.totalorder %s21, 0
      %p147 = por %p145, %p146
      %p148 = scmp.ne.s32.totalorder %s136, %s137
      %p149 = scmp.eq.s32.totalorder %s22, 1
      %p150 = por %p148, %p149
      %p152 = scmp.ne.s32.totalorder %s137, %s151
      %p153 = scmp.eq.s32.totalorder %s22, 0
      %p154 = por %p152, %p153
      %s156 = sadd.s32 %s155, 1
      %p159 = scmp.eq.s32.totalorder %s16, 1
      %p160 = scmp.ne.s32.totalorder %s155, %s157
      %p161 = scmp.eq.s32.totalorder %s16, 0
      %p162 = por %p160, %p161
      %p163 = scmp.ne.s32.totalorder %s155, %s157
      %p164 = scmp.eq.s32.totalorder %s21, 1
      %p165 = por %p163, %p164
      %p166 = scmp.ne.s32.totalorder %s157, %s158
      %p167 = scmp.eq.s32.totalorder %s21, 0
      %p168 = por %p166, %p167
      %p169 = scmp.ne.s32.totalorder %s157, %s158
      %p170 = scmp.eq.s32.totalorder %s22, 1
      %p171 = por %p169, %p170
      %p173 = scmp.ne.s32.totalorder %s158, %s172
      %p174 = scmp.eq.s32.totalorder %s22, 0
      %p175 = por %p173, %p174
      %s176 = ssub.s32 %s16, %s23
      %p177 = scmp.eq.s32.totalorder %s176, 0
      %s179 = sadd.s32 %s178, 1
      %s180 = scalar_select %p177, %s178, %s179
      %p183 = pneg %p177
      %p184 = scmp.eq.s32.totalorder %s16, 1
      %p185 = por %p183, %p184
      %p186 = scmp.ne.s32.totalorder %s178, %s181
      %p187 = scmp.eq.s32.totalorder %s16, 0
      %p188 = por %p186, %p187
      %p189 = scmp.ne.s32.totalorder %s178, %s181
      %p190 = scmp.eq.s32.totalorder %s21, 1
      %p191 = por %p189, %p190
      %p192 = scmp.ne.s32.totalorder %s181, %s182
      %p193 = scmp.eq.s32.totalorder %s21, 0
      %p194 = por %p192, %p193
      %p195 = scmp.ne.s32.totalorder %s181, %s182
      %p196 = scmp.eq.s32.totalorder %s22, 1
      %p197 = por %p195, %p196
      %p199 = scmp.ne.s32.totalorder %s182, %s198
      %p200 = scmp.eq.s32.totalorder %s22, 0
      %p201 = por %p199, %p200
      %p202 = scmp.le.s32.totalorder 1, %s16
      %p203 = scmp.lt.s32.totalorder %s16, 3
      %p204 = pnand %p202, %p203
      %p205 = pneg %p204
      // Predicated region
      $region9: #{forward.1} parent=5 // pred_check
        _
      $region10: #{forward.1} parent=5 // pred_check_branch
        %207 = sbr.rel (%p204) target = $region12
      $region11: #{forward.1} parent=5 // pred_region
        %s208 = ssub.s32 %s16, 1
        // Predicated region
        $region13: #{forward.1} parent=11 // pred_check
          %p209 = pneg %p63
        $region14: #{forward.1} parent=11 // pred_check_branch
          %211 = sbr.rel (%p209) target = $region16
        $region15: #{forward.1} parent=11 // pred_region
          _
        $region16: #{forward.1} parent=11 // pred_fallthru
          _
        // Predicated region
        $region17: #{forward.1} parent=11 // pred_check
          %p212 = pneg %p84
        $region18: #{forward.1} parent=11 // pred_check_branch
          %214 = sbr.rel (%p212) target = $region20
        $region19: #{forward.1} parent=11 // pred_region
          _
        $region20: #{forward.1} parent=11 // pred_fallthru
          _
        // Predicated region
        $region21: #{forward.1} parent=11 // pred_check
          %p215 = pneg %p105
        $region22: #{forward.1} parent=11 // pred_check_branch
          %217 = sbr.rel (%p215) target = $region24
        $region23: #{forward.1} parent=11 // pred_region
          _
        $region24: #{forward.1} parent=11 // pred_fallthru
          _
        // Predicated region
        $region25: #{forward.1} parent=11 // pred_check
          %p218 = pneg %p126
        $region26: #{forward.1} parent=11 // pred_check_branch
          %220 = sbr.rel (%p218) target = $region28
        $region27: #{forward.1} parent=11 // pred_region
          _
        $region28: #{forward.1} parent=11 // pred_fallthru
          _
        // Predicated region
        $region29: #{forward.1} parent=11 // pred_check
          %p221 = pneg %p147
        $region30: #{forward.1} parent=11 // pred_check_branch
          %223 = sbr.rel (%p221) target = $region32
        $region31: #{forward.1} parent=11 // pred_region
          _
        $region32: #{forward.1} parent=11 // pred_fallthru
          _
        // Predicated region
        $region33: #{forward.1} parent=11 // pred_check
          %p224 = pneg %p168
        $region34: #{forward.1} parent=11 // pred_check_branch
          %226 = sbr.rel (%p224) target = $region36
        $region35: #{forward.1} parent=11 // pred_region
          _
        $region36: #{forward.1} parent=11 // pred_fallthru
          _
      $region12: #{forward.1} parent=5 // pred_fallthru
        _
      %p227 = scmp.lt.s32.totalorder %s16, 2
      // Predicated region
      $region37: #{forward.1} parent=5 // pred_check
        %p228 = pneg %p227
      $region38: #{forward.1} parent=5 // pred_check_branch
        %230 = sbr.rel (%p228) target = $region40
      $region39: #{forward.1} parent=5 // pred_region
        // Predicated region
        $region41: #{forward.1} parent=39 // pred_check
          %p231 = pneg %p36
        $region42: #{forward.1} parent=39 // pred_check_branch
          %233 = sbr.rel (%p231) target = $region44
        $region43: #{forward.1} parent=39 // pred_region
          %p234 = scmp.lt.s32.totalorder %s16, 1
          %s235 = scalar_select %p234, %s16, 1
          %s236 = smul.addr %s235, 12
          %s237 = smul.addr %s236, 8
          %s238 = scalar_lea.vmem %s0, %s237
        $region44: #{forward.1} parent=39 // pred_fallthru
          _
      $region40: #{forward.1} parent=5 // pred_fallthru
        _
      %p239 = scmp.le.s32.totalorder 1, %s16
      %p240 = scmp.lt.s32.totalorder %s16, 3
      %p241 = pnand %p239, %p240
      %p242 = pneg %p241
      // Predicated region
      $region45: #{forward.1} parent=5 // pred_check
        _
      $region46: #{forward.1} parent=5 // pred_check_branch
        %244 = sbr.rel (%p241) target = $region48
      $region47: #{forward.1} parent=5 // pred_region
        %s245 = ssub.s32 %s16, 1
        %p246 = scmp.lt.s32.totalorder %s21, 1
        %s247 = scalar_select %p246, %s21, 1
        %s248 = smul.addr %s247, 12
        %s249 = smul.addr %s248, 8
        %s250 = scalar_lea.vmem %s0, %s249
        %p251 = pneg %p42
        %p252 = pneg %p39
        %p253 = pneg %p63
        %p254 = pneg %p60
        %p255 = pneg %p84
        %p256 = pneg %p81
        %p257 = pneg %p105
        %p258 = pneg %p102
        %p259 = pneg %p126
        %p260 = pneg %p123
        %p261 = pneg %p147
        %p262 = pneg %p144
        %p263 = pneg %p168
        %p264 = pneg %p165
        %p265 = pneg %p194
        %p266 = pneg %p191
        %s267 = sand.u32 %s181, 1
        %s268 = scalar_lea.sflag [#allocation3], %s267
        %s269 = sand.u32 %s181, 1
        %s270 = scalar_lea.vmem [#allocation2], %s269
        %p271 = scmp.lt.s32.totalorder %s21, 1
        %s272 = scalar_select %p271, %s21, 1
        %s273 = smul.addr %s272, 12
        %s274 = smul.addr %s273, 8
        %s275 = scalar_lea.vmem %s0, %s274
        %v277 = vld [vmem:[%s275] sm:$0xff]
        %v278 = vld [vmem:[%s275 + $0x8] sm:$0xff]
        %s279 = scalar_lea.vmem %s275, 16
        %v280 = vld [vmem:[%s279] sm:$0xff]
        %v281 = vld [vmem:[%s279 + $0x8] sm:$0xff]
        %s282 = scalar_lea.vmem %s275, 32
        %v283 = vld [vmem:[%s282] sm:$0xff]
        %v284 = vld [vmem:[%s282 + $0x8] sm:$0xff]
        %287 = vrot.lane.b32.xlu0 %v280, 48
        %v288 = vpop.permute.xlu0 %287
        %289 = vrot.lane.b32.xlu0 %v281, 48
        %v290 = vpop.permute.xlu0 %289
        %295 = vrot.lane.b32.xlu0 %v283, 96
        %v296 = vpop.permute.xlu0 %295
        %297 = vrot.lane.b32.xlu0 %v284, 96
        %v298 = vpop.permute.xlu0 %297
        %vm301 = vcmask 392192
        %v302 = vsel %vm301, %v277, %v288
        %v303 = vsel %vm301, %v278, %v290
        %vm304 = vcmask 785408
        %v305 = vsel %vm304, %v302, %v296
        %v306 = vsel %vm304, %v303, %v298
        %s307 = scalar_lea.vmem %s275, 48
        %v308 = vld [vmem:[%s307] sm:$0xff]
        %v309 = vld [vmem:[%s307 + $0x8] sm:$0xff]
        %310 = vrot.lane.b32.xlu0 %v283, 48
        %v311 = vpop.permute.xlu0 %310
        %312 = vrot.lane.b32.xlu0 %v284, 48
        %v313 = vpop.permute.xlu0 %312
        %318 = vrot.lane.b32.xlu0 %v308, 96
        %v319 = vpop.permute.xlu0 %318
        %320 = vrot.lane.b32.xlu0 %v309, 96
        %v321 = vpop.permute.xlu0 %320
        %v324 = vsel %vm301, %v280, %v311
        %v325 = vsel %vm301, %v281, %v313
        %v326 = vsel %vm304, %v324, %v319
        %v327 = vsel %vm304, %v325, %v321
        %s328 = scalar_lea.vmem %s275, 64
        %v329 = vld [vmem:[%s328] sm:$0xff]
        %v330 = vld [vmem:[%s328 + $0x8] sm:$0xff]
        %331 = vrot.lane.b32.xlu0 %v308, 48
        %v332 = vpop.permute.xlu0 %331
        %333 = vrot.lane.b32.xlu0 %v309, 48
        %v334 = vpop.permute.xlu0 %333
        %339 = vrot.lane.b32.xlu0 %v329, 96
        %v340 = vpop.permute.xlu0 %339
        %341 = vrot.lane.b32.xlu0 %v330, 96
        %v342 = vpop.permute.xlu0 %341
        %v345 = vsel %vm301, %v283, %v332
        %v346 = vsel %vm301, %v284, %v334
        %v347 = vsel %vm304, %v345, %v340
        %v348 = vsel %vm304, %v346, %v342
        %s349 = scalar_lea.vmem %s275, 80
        %v350 = vld [vmem:[%s349] sm:$0xff]
        %v351 = vld [vmem:[%s349 + $0x8] sm:$0xff]
        %352 = vrot.lane.b32.xlu0 %v329, 48
        %v353 = vpop.permute.xlu0 %352
        %354 = vrot.lane.b32.xlu0 %v330, 48
        %v355 = vpop.permute.xlu0 %354
        %360 = vrot.lane.b32.xlu0 %v350, 96
        %v361 = vpop.permute.xlu0 %360
        %362 = vrot.lane.b32.xlu0 %v351, 96
        %v363 = vpop.permute.xlu0 %362
        %v366 = vsel %vm301, %v308, %v353
        %v367 = vsel %vm301, %v309, %v355
        %v368 = vsel %vm304, %v366, %v361
        %v369 = vsel %vm304, %v367, %v363
        %v370 = vpack.c.bf16 %v306, %v305
        %v371 = vpack.c.bf16 %v298, %v296
        %v372 = vpack.c.bf16 %v327, %v326
        %v373 = vpack.c.bf16 %v321, %v319
        %v374 = vpack.c.bf16 %v348, %v347
        %v375 = vpack.c.bf16 %v342, %v340
        %v376 = vpack.c.bf16 %v369, %v368
        %v377 = vpack.c.bf16 %v363, %v361
        %v378 = vld [vmem:[%s1] sm:$0xff]
        %v379 = vld [vmem:[%s1 + $0x8] sm:$0xff]
        %v380 = vld [vmem:[%s1 + $0x10] sm:$0xff]
        %v381 = vld [vmem:[%s1 + $0x18] sm:$0xff]
        %v382 = vld [vmem:[%s1 + $0x20] sm:$0xff]
        %v383 = vld [vmem:[%s1 + $0x28] sm:$0xff]
        %v384 = vld [vmem:[%s1 + $0x30] sm:$0xff]
        %v385 = vld [vmem:[%s1 + $0x38] sm:$0xff]
        %v386 = vld [vmem:[%s1 + $0x40] sm:$0xff]
        %v387 = vld [vmem:[%s1 + $0x48] sm:$0xff]
        %v388 = vld [vmem:[%s1 + $0x50] sm:$0xff]
        %v389 = vld [vmem:[%s1 + $0x58] sm:$0xff]
        %v390 = vld [vmem:[%s1 + $0x60] sm:$0xff]
        %v391 = vld [vmem:[%s1 + $0x68] sm:$0xff]
        %v392 = vld [vmem:[%s1 + $0x70] sm:$0xff]
        %v393 = vld [vmem:[%s1 + $0x78] sm:$0xff]
        %v394 = vld [vmem:[%s1 + $0x80] sm:$0xff]
        %v395 = vld [vmem:[%s1 + $0x88] sm:$0xff]
        %s396 = scalar_lea.vmem %s1, 144
        %v397 = vld [vmem:[%s396] sm:$0xff]
        %v398 = vld [vmem:[%s396 + $0x8] sm:$0xff]
        %v399 = vld [vmem:[%s396 + $0x10] sm:$0xff]
        %v400 = vld [vmem:[%s396 + $0x18] sm:$0xff]
        %v401 = vld [vmem:[%s396 + $0x20] sm:$0xff]
        %v402 = vld [vmem:[%s396 + $0x28] sm:$0xff]
        %v403 = vld [vmem:[%s396 + $0x30] sm:$0xff]
        %v404 = vld [vmem:[%s396 + $0x38] sm:$0xff]
        %v405 = vld [vmem:[%s396 + $0x40] sm:$0xff]
        %v406 = vld [vmem:[%s396 + $0x48] sm:$0xff]
        %v407 = vld [vmem:[%s396 + $0x50] sm:$0xff]
        %v408 = vld [vmem:[%s396 + $0x58] sm:$0xff]
        %v409 = vld [vmem:[%s396 + $0x60] sm:$0xff]
        %v410 = vld [vmem:[%s396 + $0x68] sm:$0xff]
        %v411 = vld [vmem:[%s396 + $0x70] sm:$0xff]
        %v412 = vld [vmem:[%s396 + $0x78] sm:$0xff]
        %v413 = vld [vmem:[%s396 + $0x80] sm:$0xff]
        %v414 = vld [vmem:[%s396 + $0x88] sm:$0xff]
        %vm415 = vsmask.f32 7424
        %v417 = vshrl.u32 %v370, 16
        %v419 = vshll.u32 %v370, 16
        %v421 = vrot.slane %v419, 1
        %v422 = vor.u32 %v417, %v421
        %v424 = vshll.u32 %v372, 16
        %v426 = vrot.slane %v424, 1
        %v427 = vsel %vm415, %v422, %v426
        %v429 = vshrl.u32 %v371, 16
        %v431 = vshll.u32 %v371, 16
        %v433 = vrot.slane %v431, 1
        %v434 = vor.u32 %v429, %v433
        %v436 = vshll.u32 %v373, 16
        %v438 = vrot.slane %v436, 1
        %v439 = vsel %vm415, %v434, %v438
        %v440 = vshrl.u32 %v372, 16
        %v442 = vor.u32 %v440, %v426
        %v444 = vshll.u32 %v374, 16
        %v446 = vrot.slane %v444, 1
        %v447 = vsel %vm415, %v442, %v446
        %v448 = vshrl.u32 %v373, 16
        %v450 = vor.u32 %v448, %v438
        %v452 = vshll.u32 %v375, 16
        %v454 = vrot.slane %v452, 1
        %v455 = vsel %vm415, %v450, %v454
        %v456 = vshrl.u32 %v374, 16
        %v458 = vor.u32 %v456, %v446
        %v460 = vshll.u32 %v376, 16
        %v462 = vrot.slane %v460, 1
        %v463 = vsel %vm415, %v458, %v462
        %v464 = vshrl.u32 %v375, 16
        %v466 = vor.u32 %v464, %v454
        %v468 = vshll.u32 %v377, 16
        %v470 = vrot.slane %v468, 1
        %v471 = vsel %vm415, %v466, %v470
        %v472 = vshrl.u32 %v376, 16
        %v474 = vor.u32 %v472, %v462
        %v475 = vshrl.u32 %v377, 16
        %v477 = vor.u32 %v475, %v470
        %v500 = vunpack.c.l.b16 %v397
        %v501 = vunpack.c.h.b16 %v397
        %v502 = vunpack.c.l.b16 %v398
        %v503 = vunpack.c.h.b16 %v398
        %v504 = vunpack.c.l.b16 %v399
        %v505 = vunpack.c.h.b16 %v399
        %v506 = vunpack.c.l.b16 %v400
        %v507 = vunpack.c.h.b16 %v400
        %v508 = vunpack.c.l.b16 %v401
        %v509 = vunpack.c.h.b16 %v401
        %v510 = vunpack.c.l.b16 %v402
        %v511 = vunpack.c.h.b16 %v402
        %v512 = vunpack.c.l.b16 %v403
        %v513 = vunpack.c.h.b16 %v403
        %v514 = vunpack.c.l.b16 %v404
        %v515 = vunpack.c.h.b16 %v404
        %v516 = vunpack.c.l.b16 %v405
        %v517 = vunpack.c.h.b16 %v405
        %v518 = vunpack.c.l.b16 %v406
        %v519 = vunpack.c.h.b16 %v406
        %v520 = vunpack.c.l.b16 %v407
        %v521 = vunpack.c.h.b16 %v407
        %v522 = vunpack.c.l.b16 %v408
        %v523 = vunpack.c.h.b16 %v408
        %v524 = vunpack.c.l.b16 %v409
        %v525 = vunpack.c.h.b16 %v409
        %v526 = vunpack.c.l.b16 %v410
        %v527 = vunpack.c.h.b16 %v410
        %v528 = vunpack.c.l.b16 %v411
        %v529 = vunpack.c.h.b16 %v411
        %v530 = vunpack.c.l.b16 %v412
        %v531 = vunpack.c.h.b16 %v412
        %v532 = vunpack.c.l.b16 %v413
        %v533 = vunpack.c.h.b16 %v413
        %v534 = vunpack.c.l.b16 %v414
        %v535 = vunpack.c.h.b16 %v414
        %v536 = vpack.c.b16 %v502, %v500
        %v537 = vpack.c.b16 %v503, %v501
        %v538 = vpack.c.b16 %v506, %v504
        %v539 = vpack.c.b16 %v507, %v505
        %v540 = vpack.c.b16 %v510, %v508
        %v541 = vpack.c.b16 %v511, %v509
        %v542 = vpack.c.b16 %v514, %v512
        %v543 = vpack.c.b16 %v515, %v513
        %v544 = vpack.c.b16 %v518, %v516
        %v545 = vpack.c.b16 %v519, %v517
        %v546 = vpack.c.b16 %v522, %v520
        %v547 = vpack.c.b16 %v523, %v521
        %v548 = vpack.c.b16 %v526, %v524
        %v549 = vpack.c.b16 %v527, %v525
        %v550 = vpack.c.b16 %v530, %v528
        %v551 = vpack.c.b16 %v531, %v529
        %v552 = vpack.c.b16 %v534, %v532
        %v553 = vpack.c.b16 %v535, %v533
        %vm572 = vcmask 130048
        %v574 = vsel %vm572, %v439, 0
        %v577 = vsel %vm572, %v455, 0
        %v580 = vsel %vm572, %v471, 0
        %v583 = vsel %vm572, %v477, 0
        %585 = vmatprep.subr.bf16.mxu0 %v551
        %586 = vmatpush1.bf16.msra.mxu0 %v550
        %587 = vmatprep.subr.bf16.mxu0 %v549
        %588 = vmatpush1.bf16.msra.mxu0 %v548
        %589 = vmatprep.subr.bf16.mxu0 %v547
        %590 = vmatpush1.bf16.msra.mxu0 %v546
        %591 = vmatprep.subr.bf16.mxu0 %v545
        %592 = vmatpush1.bf16.msra.mxu0 %v544
        %593 = vmatprep.subr.bf16.mxu0 %v543
        %594 = vmatpush1.bf16.msra.mxu0 %v542
        %595 = vmatprep.subr.bf16.mxu0 %v541
        %596 = vmatpush1.bf16.msra.mxu0 %v540
        %597 = vmatprep.subr.bf16.mxu0 %v539
        %598 = vmatpush1.bf16.msra.mxu0 %v538
        %599 = vmatprep.subr.bf16.mxu0 %v537
        %600 = vmatpush1.bf16.msra.mxu0 %v536
        %601 = vmatprep.subr.bf16.mxu0 0
        %602 = vmatpush2.bf16.msra.mxu0 0
        %603 = vmatprep.subr.bf16.mxu0 0
        %604 = vmatpush2.bf16.msra.mxu0 0
        %605 = vmatprep.subr.bf16.mxu0 0
        %606 = vmatpush2.bf16.msra.mxu0 0
        %607 = vmatprep.subr.bf16.mxu0 0
        %608 = vmatpush2.bf16.msra.mxu0 0
        %609 = vmatprep.subr.bf16.mxu0 0
        %610 = vmatpush2.bf16.msra.mxu0 0
        %611 = vmatprep.subr.bf16.mxu0 0
        %612 = vmatpush2.bf16.msra.mxu0 0
        %613 = vmatprep.subr.bf16.mxu0 0
        %614 = vmatpush2.bf16.msra.mxu0 0
        %615 = vmatprep.subr.bf16.mxu0 %v553
        %616 = vmatpush2.bf16.msra.mxu0 %v552
        %617 = vmatprep.mubr.bf16.mxu0 %v574
        %618 = vmatmul.mubr.bf16.gmra.mxu0 %v427
        %v619 = vpop.f32.mrf.mxu0
        %v620 = vadd.f32 0.0, %v619
        %v621 = vpop.f32.mrf.mxu0
        %v622 = vadd.f32 0.0, %v621
        %v623 = vpop.f32.mrf.mxu0
        %v624 = vadd.f32 0.0, %v623
        %v625 = vpop.f32.mrf.mxu0
        %v626 = vadd.f32 0.0, %v625
        %627 = vmatprep.mubr.bf16.mxu0 %v577
        %628 = vmatmul.mubr.bf16.gmra.mxu0 %v447
        %v629 = vpop.f32.mrf.mxu0
        %v630 = vadd.f32 0.0, %v629
        %v631 = vpop.f32.mrf.mxu0
        %v632 = vadd.f32 0.0, %v631
        %v633 = vpop.f32.mrf.mxu0
        %v634 = vadd.f32 0.0, %v633
        %v635 = vpop.f32.mrf.mxu0
        %v636 = vadd.f32 0.0, %v635
        %637 = vmatprep.mubr.bf16.mxu0 %v580
        %638 = vmatmul.mubr.bf16.gmra.mxu0 %v463
        %v639 = vpop.f32.mrf.mxu0
        %v640 = vadd.f32 0.0, %v639
        %v641 = vpop.f32.mrf.mxu0
        %v642 = vadd.f32 0.0, %v641
        %v643 = vpop.f32.mrf.mxu0
        %v644 = vadd.f32 0.0, %v643
        %v645 = vpop.f32.mrf.mxu0
        %v646 = vadd.f32 0.0, %v645
        %647 = vmatprep.mubr.bf16.mxu0 %v583
        %648 = vmatmul.mubr.bf16.gmra.mxu0 %v474
        %v649 = vpop.f32.mrf.mxu0
        %v650 = vadd.f32 0.0, %v649
        %v651 = vpop.f32.mrf.mxu0
        %v652 = vadd.f32 0.0, %v651
        %v653 = vpop.f32.mrf.mxu0
        %v654 = vadd.f32 0.0, %v653
        %v655 = vpop.f32.mrf.mxu0
        %v656 = vadd.f32 0.0, %v655
        %657 = vdwg.mxu0
        %v676 = vunpack.c.l.b16 %v378
        %v677 = vunpack.c.h.b16 %v378
        %v678 = vunpack.c.l.b16 %v379
        %v679 = vunpack.c.h.b16 %v379
        %v680 = vunpack.c.l.b16 %v380
        %v681 = vunpack.c.h.b16 %v380
        %v682 = vunpack.c.l.b16 %v381
        %v683 = vunpack.c.h.b16 %v381
        %v684 = vunpack.c.l.b16 %v382
        %v685 = vunpack.c.h.b16 %v382
        %v686 = vunpack.c.l.b16 %v383
        %v687 = vunpack.c.h.b16 %v383
        %v688 = vunpack.c.l.b16 %v384
        %v689 = vunpack.c.h.b16 %v384
        %v690 = vunpack.c.l.b16 %v385
        %v691 = vunpack.c.h.b16 %v385
        %v692 = vunpack.c.l.b16 %v386
        %v693 = vunpack.c.h.b16 %v386
        %v694 = vunpack.c.l.b16 %v387
        %v695 = vunpack.c.h.b16 %v387
        %v696 = vunpack.c.l.b16 %v388
        %v697 = vunpack.c.h.b16 %v388
        %v698 = vunpack.c.l.b16 %v389
        %v699 = vunpack.c.h.b16 %v389
        %v700 = vunpack.c.l.b16 %v390
        %v701 = vunpack.c.h.b16 %v390
        %v702 = vunpack.c.l.b16 %v391
        %v703 = vunpack.c.h.b16 %v391
        %v704 = vunpack.c.l.b16 %v392
        %v705 = vunpack.c.h.b16 %v392
        %v706 = vunpack.c.l.b16 %v393
        %v707 = vunpack.c.h.b16 %v393
        %v708 = vunpack.c.l.b16 %v394
        %v709 = vunpack.c.h.b16 %v394
        %v710 = vunpack.c.l.b16 %v395
        %v711 = vunpack.c.h.b16 %v395
        %v712 = vpack.c.b16 %v678, %v676
        %v713 = vpack.c.b16 %v679, %v677
        %v714 = vpack.c.b16 %v682, %v680
        %v715 = vpack.c.b16 %v683, %v681
        %v716 = vpack.c.b16 %v686, %v684
        %v717 = vpack.c.b16 %v687, %v685
        %v718 = vpack.c.b16 %v690, %v688
        %v719 = vpack.c.b16 %v691, %v689
        %v720 = vpack.c.b16 %v694, %v692
        %v721 = vpack.c.b16 %v695, %v693
        %v722 = vpack.c.b16 %v698, %v696
        %v723 = vpack.c.b16 %v699, %v697
        %v724 = vpack.c.b16 %v702, %v700
        %v725 = vpack.c.b16 %v703, %v701
        %v726 = vpack.c.b16 %v706, %v704
        %v727 = vpack.c.b16 %v707, %v705
        %v728 = vpack.c.b16 %v710, %v708
        %v729 = vpack.c.b16 %v711, %v709
        %v748 = vsel %vm572, %v371, 0
        %v750 = vsel %vm572, %v373, 0
        %v752 = vsel %vm572, %v375, 0
        %v754 = vsel %vm572, %v377, 0
        %756 = vmatprep.subr.bf16.mxu0 %v727
        %757 = vmatpush1.bf16.msra.mxu0 %v726
        %758 = vmatprep.subr.bf16.mxu0 %v725
        %759 = vmatpush1.bf16.msra.mxu0 %v724
        %760 = vmatprep.subr.bf16.mxu0 %v723
        %761 = vmatpush1.bf16.msra.mxu0 %v722
        %762 = vmatprep.subr.bf16.mxu0 %v721
        %763 = vmatpush1.bf16.msra.mxu0 %v720
        %764 = vmatprep.subr.bf16.mxu0 %v719
        %765 = vmatpush1.bf16.msra.mxu0 %v718
        %766 = vmatprep.subr.bf16.mxu0 %v717
        %767 = vmatpush1.bf16.msra.mxu0 %v716
        %768 = vmatprep.subr.bf16.mxu0 %v715
        %769 = vmatpush1.bf16.msra.mxu0 %v714
        %770 = vmatprep.subr.bf16.mxu0 %v713
        %771 = vmatpush1.bf16.msra.mxu0 %v712
        %772 = vmatprep.subr.bf16.mxu0 0
        %773 = vmatpush2.bf16.msra.mxu0 0
        %774 = vmatprep.subr.bf16.mxu0 0
        %775 = vmatpush2.bf16.msra.mxu0 0
        %776 = vmatprep.subr.bf16.mxu0 0
        %777 = vmatpush2.bf16.msra.mxu0 0
        %778 = vmatprep.subr.bf16.mxu0 0
        %779 = vmatpush2.bf16.msra.mxu0 0
        %780 = vmatprep.subr.bf16.mxu0 0
        %781 = vmatpush2.bf16.msra.mxu0 0
        %782 = vmatprep.subr.bf16.mxu0 0
        %783 = vmatpush2.bf16.msra.mxu0 0
        %784 = vmatprep.subr.bf16.mxu0 0
        %785 = vmatpush2.bf16.msra.mxu0 0
        %786 = vmatprep.subr.bf16.mxu0 %v729
        %787 = vmatpush2.bf16.msra.mxu0 %v728
        %788 = vmatprep.mubr.bf16.mxu0 %v748
        %789 = vmatmul.mubr.bf16.gmra.mxu0 %v370
        %v790 = vpop.f32.mrf.mxu0
        %v791 = vadd.f32 %v620, %v790
        %v792 = vpop.f32.mrf.mxu0
        %v793 = vadd.f32 %v622, %v792
        %v794 = vpop.f32.mrf.mxu0
        %v795 = vadd.f32 %v624, %v794
        %v796 = vpop.f32.mrf.mxu0
        %v797 = vadd.f32 %v626, %v796
        %798 = vmatprep.mubr.bf16.mxu0 %v750
        %799 = vmatmul.mubr.bf16.gmra.mxu0 %v372
        %v800 = vpop.f32.mrf.mxu0
        %v801 = vadd.f32 %v630, %v800
        %v802 = vpop.f32.mrf.mxu0
        %v803 = vadd.f32 %v632, %v802
        %v804 = vpop.f32.mrf.mxu0
        %v805 = vadd.f32 %v634, %v804
        %v806 = vpop.f32.mrf.mxu0
        %v807 = vadd.f32 %v636, %v806
        %808 = vmatprep.mubr.bf16.mxu0 %v752
        %809 = vmatmul.mubr.bf16.gmra.mxu0 %v374
        %v810 = vpop.f32.mrf.mxu0
        %v811 = vadd.f32 %v640, %v810
        %v812 = vpop.f32.mrf.mxu0
        %v813 = vadd.f32 %v642, %v812
        %v814 = vpop.f32.mrf.mxu0
        %v815 = vadd.f32 %v644, %v814
        %v816 = vpop.f32.mrf.mxu0
        %v817 = vadd.f32 %v646, %v816
        %818 = vmatprep.mubr.bf16.mxu0 %v754
        %819 = vmatmul.mubr.bf16.gmra.mxu0 %v376
        %v820 = vpop.f32.mrf.mxu0
        %v821 = vadd.f32 %v650, %v820
        %v822 = vpop.f32.mrf.mxu0
        %v823 = vadd.f32 %v652, %v822
        %v824 = vpop.f32.mrf.mxu0
        %v825 = vadd.f32 %v654, %v824
        %v826 = vpop.f32.mrf.mxu0
        %v827 = vadd.f32 %v656, %v826
        %828 = vdwg.mxu0
        %s829 = scalar_lea.vmem %s1, 288
        %v830 = vld [vmem:[%s829] sm:$0xff]
        %v831 = vld [vmem:[%s829 + $0x8] sm:$0xff]
        %v832 = vld [vmem:[%s829 + $0x10] sm:$0xff]
        %v833 = vld [vmem:[%s829 + $0x18] sm:$0xff]
        %v834 = vld [vmem:[%s829 + $0x20] sm:$0xff]
        %v835 = vld [vmem:[%s829 + $0x28] sm:$0xff]
        %v836 = vld [vmem:[%s829 + $0x30] sm:$0xff]
        %v837 = vld [vmem:[%s829 + $0x38] sm:$0xff]
        %v838 = vld [vmem:[%s829 + $0x40] sm:$0xff]
        %v839 = vld [vmem:[%s829 + $0x48] sm:$0xff]
        %v840 = vld [vmem:[%s829 + $0x50] sm:$0xff]
        %v841 = vld [vmem:[%s829 + $0x58] sm:$0xff]
        %v842 = vld [vmem:[%s829 + $0x60] sm:$0xff]
        %v843 = vld [vmem:[%s829 + $0x68] sm:$0xff]
        %v844 = vld [vmem:[%s829 + $0x70] sm:$0xff]
        %v845 = vld [vmem:[%s829 + $0x78] sm:$0xff]
        %v846 = vld [vmem:[%s829 + $0x80] sm:$0xff]
        %v847 = vld [vmem:[%s829 + $0x88] sm:$0xff]
        %vm856 = vcmask 1046528
        %v857 = vrot.slane %v370, 1
        %v858 = vrot.slane %v372, 1
        %v859 = vsel %vm856, %v857, %v858
        %v860 = vrot.slane %v371, 1
        %v861 = vrot.slane %v373, 1
        %v862 = vsel %vm856, %v860, %v861
        %v863 = vrot.slane %v374, 1
        %v864 = vsel %vm856, %v858, %v863
        %v865 = vrot.slane %v375, 1
        %v866 = vsel %vm856, %v861, %v865
        %v867 = vrot.slane %v376, 1
        %v868 = vsel %vm856, %v863, %v867
        %v869 = vrot.slane %v377, 1
        %v870 = vsel %vm856, %v865, %v869
        %v893 = vunpack.c.l.b16 %v830
        %v894 = vunpack.c.h.b16 %v830
        %v895 = vunpack.c.l.b16 %v831
        %v896 = vunpack.c.h.b16 %v831
        %v897 = vunpack.c.l.b16 %v832
        %v898 = vunpack.c.h.b16 %v832
        %v899 = vunpack.c.l.b16 %v833
        %v900 = vunpack.c.h.b16 %v833
        %v901 = vunpack.c.l.b16 %v834
        %v902 = vunpack.c.h.b16 %v834
        %v903 = vunpack.c.l.b16 %v835
        %v904 = vunpack.c.h.b16 %v835
        %v905 = vunpack.c.l.b16 %v836
        %v906 = vunpack.c.h.b16 %v836
        %v907 = vunpack.c.l.b16 %v837
        %v908 = vunpack.c.h.b16 %v837
        %v909 = vunpack.c.l.b16 %v838
        %v910 = vunpack.c.h.b16 %v838
        %v911 = vunpack.c.l.b16 %v839
        %v912 = vunpack.c.h.b16 %v839
        %v913 = vunpack.c.l.b16 %v840
        %v914 = vunpack.c.h.b16 %v840
        %v915 = vunpack.c.l.b16 %v841
        %v916 = vunpack.c.h.b16 %v841
        %v917 = vunpack.c.l.b16 %v842
        %v918 = vunpack.c.h.b16 %v842
        %v919 = vunpack.c.l.b16 %v843
        %v920 = vunpack.c.h.b16 %v843
        %v921 = vunpack.c.l.b16 %v844
        %v922 = vunpack.c.h.b16 %v844
        %v923 = vunpack.c.l.b16 %v845
        %v924 = vunpack.c.h.b16 %v845
        %v925 = vunpack.c.l.b16 %v846
        %v926 = vunpack.c.h.b16 %v846
        %v927 = vunpack.c.l.b16 %v847
        %v928 = vunpack.c.h.b16 %v847
        %v929 = vpack.c.b16 %v895, %v893
        %v930 = vpack.c.b16 %v896, %v894
        %v931 = vpack.c.b16 %v899, %v897
        %v932 = vpack.c.b16 %v900, %v898
        %v933 = vpack.c.b16 %v903, %v901
        %v934 = vpack.c.b16 %v904, %v902
        %v935 = vpack.c.b16 %v907, %v905
        %v936 = vpack.c.b16 %v908, %v906
        %v937 = vpack.c.b16 %v911, %v909
        %v938 = vpack.c.b16 %v912, %v910
        %v939 = vpack.c.b16 %v915, %v913
        %v940 = vpack.c.b16 %v916, %v914
        %v941 = vpack.c.b16 %v919, %v917
        %v942 = vpack.c.b16 %v920, %v918
        %v943 = vpack.c.b16 %v923, %v921
        %v944 = vpack.c.b16 %v924, %v922
        %v945 = vpack.c.b16 %v927, %v925
        %v946 = vpack.c.b16 %v928, %v926
        %v966 = vsel %vm572, %v862, 0
        %v969 = vsel %vm572, %v866, 0
        %v972 = vsel %vm572, %v870, 0
        %v975 = vsel %vm572, %v869, 0
        %977 = vmatprep.subr.bf16.mxu0 %v944
        %978 = vmatpush1.bf16.msra.mxu0 %v943
        %979 = vmatprep.subr.bf16.mxu0 %v942
        %980 = vmatpush1.bf16.msra.mxu0 %v941
        %981 = vmatprep.subr.bf16.mxu0 %v940
        %982 = vmatpush1.bf16.msra.mxu0 %v939
        %983 = vmatprep.subr.bf16.mxu0 %v938
        %984 = vmatpush1.bf16.msra.mxu0 %v937
        %985 = vmatprep.subr.bf16.mxu0 %v936
        %986 = vmatpush1.bf16.msra.mxu0 %v935
        %987 = vmatprep.subr.bf16.mxu0 %v934
        %988 = vmatpush1.bf16.msra.mxu0 %v933
        %989 = vmatprep.subr.bf16.mxu0 %v932
        %990 = vmatpush1.bf16.msra.mxu0 %v931
        %991 = vmatprep.subr.bf16.mxu0 %v930
        %992 = vmatpush1.bf16.msra.mxu0 %v929
        %993 = vmatprep.subr.bf16.mxu0 0
        %994 = vmatpush2.bf16.msra.mxu0 0
        %995 = vmatprep.subr.bf16.mxu0 0
        %996 = vmatpush2.bf16.msra.mxu0 0
        %997 = vmatprep.subr.bf16.mxu0 0
        %998 = vmatpush2.bf16.msra.mxu0 0
        %999 = vmatprep.subr.bf16.mxu0 0
        %1000 = vmatpush2.bf16.msra.mxu0 0
        %1001 = vmatprep.subr.bf16.mxu0 0
        %1002 = vmatpush2.bf16.msra.mxu0 0
        %1003 = vmatprep.subr.bf16.mxu0 0
        %1004 = vmatpush2.bf16.msra.mxu0 0
        %1005 = vmatprep.subr.bf16.mxu0 0
        %1006 = vmatpush2.bf16.msra.mxu0 0
        %1007 = vmatprep.subr.bf16.mxu0 %v946
        %1008 = vmatpush2.bf16.msra.mxu0 %v945
        %1009 = vmatprep.mubr.bf16.mxu0 %v966
        %1010 = vmatmul.mubr.bf16.gmra.mxu0 %v859
        %v1011 = vpop.f32.mrf.mxu0
        %v1012 = vadd.f32 0.0, %v1011
        %v1013 = vpop.f32.mrf.mxu0
        %v1014 = vadd.f32 0.0, %v1013
        %v1015 = vpop.f32.mrf.mxu0
        %v1016 = vadd.f32 0.0, %v1015
        %v1017 = vpop.f32.mrf.mxu0
        %v1018 = vadd.f32 0.0, %v1017
        %1019 = vmatprep.mubr.bf16.mxu0 %v969
        %1020 = vmatmul.mubr.bf16.gmra.mxu0 %v864
        %v1021 = vpop.f32.mrf.mxu0
        %v1022 = vadd.f32 0.0, %v1021
        %v1023 = vpop.f32.mrf.mxu0
        %v1024 = vadd.f32 0.0, %v1023
        %v1025 = vpop.f32.mrf.mxu0
        %v1026 = vadd.f32 0.0, %v1025
        %v1027 = vpop.f32.mrf.mxu0
        %v1028 = vadd.f32 0.0, %v1027
        %1029 = vmatprep.mubr.bf16.mxu0 %v972
        %1030 = vmatmul.mubr.bf16.gmra.mxu0 %v868
        %v1031 = vpop.f32.mrf.mxu0
        %v1032 = vadd.f32 0.0, %v1031
        %v1033 = vpop.f32.mrf.mxu0
        %v1034 = vadd.f32 0.0, %v1033
        %v1035 = vpop.f32.mrf.mxu0
        %v1036 = vadd.f32 0.0, %v1035
        %v1037 = vpop.f32.mrf.mxu0
        %v1038 = vadd.f32 0.0, %v1037
        %1039 = vmatprep.mubr.bf16.mxu0 %v975
        %1040 = vmatmul.mubr.bf16.gmra.mxu0 %v867
        %v1041 = vpop.f32.mrf.mxu0
        %v1042 = vadd.f32 0.0, %v1041
        %v1043 = vpop.f32.mrf.mxu0
        %v1044 = vadd.f32 0.0, %v1043
        %v1045 = vpop.f32.mrf.mxu0
        %v1046 = vadd.f32 0.0, %v1045
        %v1047 = vpop.f32.mrf.mxu0
        %v1048 = vadd.f32 0.0, %v1047
        %1049 = vdwg.mxu0
        %v1050 = vadd.f32 %v791, %v1012
        %v1051 = vadd.f32 %v793, %v1014
        %v1052 = vadd.f32 %v795, %v1016
        %v1053 = vadd.f32 %v797, %v1018
        %v1054 = vadd.f32 %v801, %v1022
        %v1055 = vadd.f32 %v803, %v1024
        %v1056 = vadd.f32 %v805, %v1026
        %v1057 = vadd.f32 %v807, %v1028
        %v1058 = vadd.f32 %v811, %v1032
        %v1059 = vadd.f32 %v813, %v1034
        %v1060 = vadd.f32 %v815, %v1036
        %v1061 = vadd.f32 %v817, %v1038
        %v1062 = vadd.f32 %v821, %v1042
        %v1063 = vadd.f32 %v823, %v1044
        %v1064 = vadd.f32 %v825, %v1046
        %v1065 = vadd.f32 %v827, %v1048
        %v1066 = vld [vmem:[%s2] sm:$0x3]
        %v1068 = vlaneseq
        %v1069 = vshrl.u32 %v1068, 7
        %v1070 = vsub.s32 0, %v1069
        %v1071 = vrot.slane %v1066, %v1070
        %v1072 = vlaneseq
        %v1073 = vshrl.u32 %v1072, 7
        %v1074 = vsub.s32 1, %v1073
        %v1075 = vrot.slane %v1066, %v1074
        %v1078 = vadd.f32 %v1050, %v1071
        %v1079 = vadd.f32 %v1051, %v1075
        %v1080 = vadd.f32 %v1052, %v1071
        %v1081 = vadd.f32 %v1053, %v1075
        %v1082 = vadd.f32 %v1054, %v1071
        %v1083 = vadd.f32 %v1055, %v1075
        %v1084 = vadd.f32 %v1056, %v1071
        %v1085 = vadd.f32 %v1057, %v1075
        %v1086 = vadd.f32 %v1058, %v1071
        %v1087 = vadd.f32 %v1059, %v1075
        %v1088 = vadd.f32 %v1060, %v1071
        %v1089 = vadd.f32 %v1061, %v1075
        %v1090 = vadd.f32 %v1062, %v1071
        %v1091 = vadd.f32 %v1063, %v1075
        %v1092 = vadd.f32 %v1064, %v1071
        %v1093 = vadd.f32 %v1065, %v1075
        %1110 = vrot.lane.b32.xlu0 %v1078, 112
        %v1111 = vpop.permute.xlu0 %1110
        %1112 = vrot.lane.b32.xlu0 %v1079, 112
        %v1113 = vpop.permute.xlu0 %1112
        %1114 = vrot.lane.b32.xlu0 %v1080, 112
        %v1115 = vpop.permute.xlu0 %1114
        %1116 = vrot.lane.b32.xlu0 %v1081, 112
        %v1117 = vpop.permute.xlu0 %1116
        %1118 = vrot.lane.b32.xlu0 %v1082, 112
        %v1119 = vpop.permute.xlu0 %1118
        %1120 = vrot.lane.b32.xlu0 %v1083, 112
        %v1121 = vpop.permute.xlu0 %1120
        %1122 = vrot.lane.b32.xlu0 %v1084, 112
        %v1123 = vpop.permute.xlu0 %1122
        %1124 = vrot.lane.b32.xlu0 %v1085, 112
        %v1125 = vpop.permute.xlu0 %1124
        %1126 = vrot.lane.b32.xlu0 %v1086, 112
        %v1127 = vpop.permute.xlu0 %1126
        %1128 = vrot.lane.b32.xlu0 %v1087, 112
        %v1129 = vpop.permute.xlu0 %1128
        %1130 = vrot.lane.b32.xlu0 %v1088, 112
        %v1131 = vpop.permute.xlu0 %1130
        %1132 = vrot.lane.b32.xlu0 %v1089, 112
        %v1133 = vpop.permute.xlu0 %1132
        %1134 = vrot.lane.b32.xlu0 %v1090, 112
        %v1135 = vpop.permute.xlu0 %1134
        %1136 = vrot.lane.b32.xlu0 %v1091, 112
        %v1137 = vpop.permute.xlu0 %1136
        %1138 = vrot.lane.b32.xlu0 %v1092, 112
        %v1139 = vpop.permute.xlu0 %1138
        %1140 = vrot.lane.b32.xlu0 %v1093, 112
        %v1141 = vpop.permute.xlu0 %1140
        %vm1142 = vcmask 916480
        %v1143 = vsel %vm1142, %v1111, %v1113
        %v1144 = vsel %vm1142, %v1115, %v1117
        %v1145 = vsel %vm1142, %v1119, %v1121
        %v1146 = vsel %vm1142, %v1123, %v1125
        %v1147 = vsel %vm1142, %v1127, %v1129
        %v1148 = vsel %vm1142, %v1131, %v1133
        %v1149 = vsel %vm1142, %v1135, %v1137
        %v1150 = vsel %vm1142, %v1139, %v1141
        %v1167 = vmax.f32 %v1078, %v1143
        %v1168 = vmax.f32 %v1079, %v1113
        %v1169 = vmax.f32 %v1080, %v1144
        %v1170 = vmax.f32 %v1081, %v1117
        %v1171 = vmax.f32 %v1082, %v1145
        %v1172 = vmax.f32 %v1083, %v1121
        %v1173 = vmax.f32 %v1084, %v1146
        %v1174 = vmax.f32 %v1085, %v1125
        %v1175 = vmax.f32 %v1086, %v1147
        %v1176 = vmax.f32 %v1087, %v1129
        %v1177 = vmax.f32 %v1088, %v1148
        %v1178 = vmax.f32 %v1089, %v1133
        %v1179 = vmax.f32 %v1090, %v1149
        %v1180 = vmax.f32 %v1091, %v1137
        %v1181 = vmax.f32 %v1092, %v1150
        %v1182 = vmax.f32 %v1093, %v1141
        %vm1199 = vcmask 1046528
        %v1200 = vrot.slane %v1167, 1
        %v1201 = vrot.slane %v1169, 1
        %v1202 = vsel %vm1199, %v1200, %v1201
        %v1203 = vrot.slane %v1168, 1
        %v1204 = vrot.slane %v1170, 1
        %v1205 = vsel %vm1199, %v1203, %v1204
        %v1206 = vrot.slane %v1171, 1
        %v1207 = vsel %vm1199, %v1201, %v1206
        %v1208 = vrot.slane %v1172, 1
        %v1209 = vsel %vm1199, %v1204, %v1208
        %v1210 = vrot.slane %v1173, 1
        %v1211 = vsel %vm1199, %v1206, %v1210
        %v1212 = vrot.slane %v1174, 1
        %v1213 = vsel %vm1199, %v1208, %v1212
        %v1214 = vrot.slane %v1175, 1
        %v1215 = vsel %vm1199, %v1210, %v1214
        %v1216 = vrot.slane %v1176, 1
        %v1217 = vsel %vm1199, %v1212, %v1216
        %v1218 = vrot.slane %v1177, 1
        %v1219 = vsel %vm1199, %v1214, %v1218
        %v1220 = vrot.slane %v1178, 1
        %v1221 = vsel %vm1199, %v1216, %v1220
        %v1222 = vrot.slane %v1179, 1
        %v1223 = vsel %vm1199, %v1218, %v1222
        %v1224 = vrot.slane %v1180, 1
        %v1225 = vsel %vm1199, %v1220, %v1224
        %v1226 = vrot.slane %v1181, 1
        %v1227 = vsel %vm1199, %v1222, %v1226
        %v1228 = vrot.slane %v1182, 1
        %v1229 = vsel %vm1199, %v1224, %v1228
        %v1246 = vmax.f32 %v1167, %v1202
        %v1247 = vmax.f32 %v1168, %v1205
        %v1248 = vmax.f32 %v1169, %v1207
        %v1249 = vmax.f32 %v1170, %v1209
        %v1250 = vmax.f32 %v1171, %v1211
        %v1251 = vmax.f32 %v1172, %v1213
        %v1252 = vmax.f32 %v1173, %v1215
        %v1253 = vmax.f32 %v1174, %v1217
        %v1254 = vmax.f32 %v1175, %v1219
        %v1255 = vmax.f32 %v1176, %v1221
        %v1256 = vmax.f32 %v1177, %v1223
        %v1257 = vmax.f32 %v1178, %v1225
        %v1258 = vmax.f32 %v1179, %v1227
        %v1259 = vmax.f32 %v1180, %v1229
        %v1260 = vmax.f32 %v1181, %v1226
        %v1261 = vmax.f32 %v1182, %v1228
        %v1262 = vmax.f32 %v1246, %v1250
        %v1263 = vmax.f32 %v1247, %v1251
        %v1264 = vmax.f32 %v1248, %v1252
        %v1265 = vmax.f32 %v1249, %v1253
        %v1266 = vmax.f32 %v1250, %v1254
        %v1267 = vmax.f32 %v1251, %v1255
        %v1268 = vmax.f32 %v1252, %v1256
        %v1269 = vmax.f32 %v1253, %v1257
        %v1270 = vmax.f32 %v1254, %v1258
        %v1271 = vmax.f32 %v1255, %v1259
        %v1272 = vmax.f32 %v1256, %v1260
        %v1273 = vmax.f32 %v1257, %v1261
        %v1274 = vpack.c.bf16 %v1264, %v1262
        %v1275 = vpack.c.bf16 %v1265, %v1263
        %v1276 = vpack.c.bf16 %v1268, %v1266
        %v1277 = vpack.c.bf16 %v1269, %v1267
        %v1278 = vpack.c.bf16 %v1272, %v1270
        %v1279 = vpack.c.bf16 %v1273, %v1271
        %v1280 = vld [vmem:[%s3] sm:$0xff]
        %v1281 = vld [vmem:[%s3 + $0x8] sm:$0xff]
        %v1282 = vld [vmem:[%s3 + $0x10] sm:$0xff]
        %v1283 = vld [vmem:[%s3 + $0x18] sm:$0xff]
        %v1284 = vld [vmem:[%s3 + $0x20] sm:$0xff]
        %v1285 = vld [vmem:[%s3 + $0x28] sm:$0xff]
        %v1286 = vld [vmem:[%s3 + $0x30] sm:$0xff]
        %v1287 = vld [vmem:[%s3 + $0x38] sm:$0xff]
        %v1288 = vld [vmem:[%s3 + $0x40] sm:$0xff]
        %v1289 = vld [vmem:[%s3 + $0x48] sm:$0xff]
        %v1290 = vld [vmem:[%s3 + $0x50] sm:$0xff]
        %v1291 = vld [vmem:[%s3 + $0x58] sm:$0xff]
        %v1292 = vld [vmem:[%s3 + $0x60] sm:$0xff]
        %v1293 = vld [vmem:[%s3 + $0x68] sm:$0xff]
        %v1294 = vld [vmem:[%s3 + $0x70] sm:$0xff]
        %v1295 = vld [vmem:[%s3 + $0x78] sm:$0xff]
        %v1296 = vld [vmem:[%s3 + $0x80] sm:$0xff]
        %v1297 = vld [vmem:[%s3 + $0x88] sm:$0xff]
        %v1298 = vld [vmem:[%s3 + $0x90] sm:$0xff]
        %v1299 = vld [vmem:[%s3 + $0x98] sm:$0xff]
        %v1300 = vld [vmem:[%s3 + $0xa0] sm:$0xff]
        %v1301 = vld [vmem:[%s3 + $0xa8] sm:$0xff]
        %v1302 = vld [vmem:[%s3 + $0xb0] sm:$0xff]
        %v1303 = vld [vmem:[%s3 + $0xb8] sm:$0xff]
        %v1304 = vld [vmem:[%s3 + $0xc0] sm:$0xff]
        %v1305 = vld [vmem:[%s3 + $0xc8] sm:$0xff]
        %s1306 = scalar_lea.vmem %s3, 208
        %v1307 = vld [vmem:[%s1306] sm:$0xff]
        %v1308 = vld [vmem:[%s1306 + $0x8] sm:$0xff]
        %v1309 = vld [vmem:[%s1306 + $0x10] sm:$0xff]
        %v1310 = vld [vmem:[%s1306 + $0x18] sm:$0xff]
        %v1311 = vld [vmem:[%s1306 + $0x20] sm:$0xff]
        %v1312 = vld [vmem:[%s1306 + $0x28] sm:$0xff]
        %v1313 = vld [vmem:[%s1306 + $0x30] sm:$0xff]
        %v1314 = vld [vmem:[%s1306 + $0x38] sm:$0xff]
        %v1315 = vld [vmem:[%s1306 + $0x40] sm:$0xff]
        %v1316 = vld [vmem:[%s1306 + $0x48] sm:$0xff]
        %v1317 = vld [vmem:[%s1306 + $0x50] sm:$0xff]
        %v1318 = vld [vmem:[%s1306 + $0x58] sm:$0xff]
        %v1319 = vld [vmem:[%s1306 + $0x60] sm:$0xff]
        %v1320 = vld [vmem:[%s1306 + $0x68] sm:$0xff]
        %v1321 = vld [vmem:[%s1306 + $0x70] sm:$0xff]
        %v1322 = vld [vmem:[%s1306 + $0x78] sm:$0xff]
        %v1323 = vld [vmem:[%s1306 + $0x80] sm:$0xff]
        %v1324 = vld [vmem:[%s1306 + $0x88] sm:$0xff]
        %v1325 = vld [vmem:[%s1306 + $0x90] sm:$0xff]
        %v1326 = vld [vmem:[%s1306 + $0x98] sm:$0xff]
        %v1327 = vld [vmem:[%s1306 + $0xa0] sm:$0xff]
        %v1328 = vld [vmem:[%s1306 + $0xa8] sm:$0xff]
        %v1329 = vld [vmem:[%s1306 + $0xb0] sm:$0xff]
        %v1330 = vld [vmem:[%s1306 + $0xb8] sm:$0xff]
        %v1331 = vld [vmem:[%s1306 + $0xc0] sm:$0xff]
        %v1332 = vld [vmem:[%s1306 + $0xc8] sm:$0xff]
        %v1339 = vrot.slane %v1274, 1
        %v1340 = vrot.slane %v1276, 1
        %v1341 = vsel %vm856, %v1339, %v1340
        %v1342 = vrot.slane %v1275, 1
        %v1343 = vrot.slane %v1277, 1
        %v1344 = vsel %vm856, %v1342, %v1343
        %v1345 = vrot.slane %v1278, 1
        %v1346 = vsel %vm856, %v1340, %v1345
        %v1347 = vrot.slane %v1279, 1
        %v1348 = vsel %vm856, %v1343, %v1347
        %v1378 = vunpack.c.l.b16 %v1307
        %v1379 = vunpack.c.h.b16 %v1307
        %v1380 = vunpack.c.l.b16 %v1308
        %v1381 = vunpack.c.h.b16 %v1308
        %v1382 = vunpack.c.l.b16 %v1309
        %v1383 = vunpack.c.h.b16 %v1309
        %v1384 = vunpack.c.l.b16 %v1310
        %v1385 = vunpack.c.h.b16 %v1310
        %v1386 = vunpack.c.l.b16 %v1311
        %v1387 = vunpack.c.h.b16 %v1311
        %v1388 = vunpack.c.l.b16 %v1312
        %v1389 = vunpack.c.h.b16 %v1312
        %v1390 = vunpack.c.l.b16 %v1313
        %v1391 = vunpack.c.h.b16 %v1313
        %v1392 = vunpack.c.l.b16 %v1314
        %v1393 = vunpack.c.h.b16 %v1314
        %v1394 = vunpack.c.l.b16 %v1315
        %v1395 = vunpack.c.h.b16 %v1315
        %v1396 = vunpack.c.l.b16 %v1316
        %v1397 = vunpack.c.h.b16 %v1316
        %v1398 = vunpack.c.l.b16 %v1317
        %v1399 = vunpack.c.h.b16 %v1317
        %v1400 = vunpack.c.l.b16 %v1318
        %v1401 = vunpack.c.h.b16 %v1318
        %v1402 = vunpack.c.l.b16 %v1319
        %v1403 = vunpack.c.h.b16 %v1319
        %v1404 = vunpack.c.l.b16 %v1320
        %v1405 = vunpack.c.h.b16 %v1320
        %v1406 = vunpack.c.l.b16 %v1321
        %v1407 = vunpack.c.h.b16 %v1321
        %v1408 = vunpack.c.l.b16 %v1322
        %v1409 = vunpack.c.h.b16 %v1322
        %v1410 = vunpack.c.l.b16 %v1323
        %v1411 = vunpack.c.h.b16 %v1323
        %v1412 = vunpack.c.l.b16 %v1324
        %v1413 = vunpack.c.h.b16 %v1324
        %v1414 = vunpack.c.l.b16 %v1325
        %v1415 = vunpack.c.h.b16 %v1325
        %v1416 = vunpack.c.l.b16 %v1326
        %v1417 = vunpack.c.h.b16 %v1326
        %v1418 = vunpack.c.l.b16 %v1327
        %v1419 = vunpack.c.h.b16 %v1327
        %v1420 = vunpack.c.l.b16 %v1328
        %v1421 = vunpack.c.h.b16 %v1328
        %v1422 = vunpack.c.l.b16 %v1329
        %v1423 = vunpack.c.h.b16 %v1329
        %v1424 = vunpack.c.l.b16 %v1330
        %v1425 = vunpack.c.h.b16 %v1330
        %v1426 = vunpack.c.l.b16 %v1331
        %v1427 = vunpack.c.h.b16 %v1331
        %v1428 = vunpack.c.l.b16 %v1332
        %v1429 = vunpack.c.h.b16 %v1332
        %v1430 = vpack.c.b16 %v1380, %v1378
        %v1431 = vpack.c.b16 %v1381, %v1379
        %v1432 = vpack.c.b16 %v1384, %v1382
        %v1433 = vpack.c.b16 %v1385, %v1383
        %v1434 = vpack.c.b16 %v1388, %v1386
        %v1435 = vpack.c.b16 %v1389, %v1387
        %v1436 = vpack.c.b16 %v1392, %v1390
        %v1437 = vpack.c.b16 %v1393, %v1391
        %v1438 = vpack.c.b16 %v1396, %v1394
        %v1439 = vpack.c.b16 %v1397, %v1395
        %v1440 = vpack.c.b16 %v1400, %v1398
        %v1441 = vpack.c.b16 %v1401, %v1399
        %v1442 = vpack.c.b16 %v1404, %v1402
        %v1443 = vpack.c.b16 %v1405, %v1403
        %v1444 = vpack.c.b16 %v1408, %v1406
        %v1445 = vpack.c.b16 %v1409, %v1407
        %v1446 = vpack.c.b16 %v1412, %v1410
        %v1447 = vpack.c.b16 %v1413, %v1411
        %v1448 = vpack.c.b16 %v1416, %v1414
        %v1449 = vpack.c.b16 %v1417, %v1415
        %v1450 = vpack.c.b16 %v1420, %v1418
        %v1451 = vpack.c.b16 %v1421, %v1419
        %v1452 = vpack.c.b16 %v1424, %v1422
        %v1453 = vpack.c.b16 %v1425, %v1423
        %v1454 = vpack.c.b16 %v1428, %v1426
        %v1455 = vpack.c.b16 %v1429, %v1427
        %vm1482 = vcmask 654336
        %v1484 = vsel %vm1482, %v1344, 0
        %v1487 = vsel %vm1482, %v1348, 0
        %v1490 = vsel %vm1482, %v1347, 0
        %1492 = vmatprep.subr.bf16.mxu0 %v1445
        %1493 = vmatpush1.bf16.msra.mxu0 %v1444
        %1494 = vmatprep.subr.bf16.mxu0 %v1443
        %1495 = vmatpush1.bf16.msra.mxu0 %v1442
        %1496 = vmatprep.subr.bf16.mxu0 %v1441
        %1497 = vmatpush1.bf16.msra.mxu0 %v1440
        %1498 = vmatprep.subr.bf16.mxu0 %v1439
        %1499 = vmatpush1.bf16.msra.mxu0 %v1438
        %1500 = vmatprep.subr.bf16.mxu0 %v1437
        %1501 = vmatpush1.bf16.msra.mxu0 %v1436
        %1502 = vmatprep.subr.bf16.mxu0 %v1435
        %1503 = vmatpush1.bf16.msra.mxu0 %v1434
        %1504 = vmatprep.subr.bf16.mxu0 %v1433
        %1505 = vmatpush1.bf16.msra.mxu0 %v1432
        %1506 = vmatprep.subr.bf16.mxu0 %v1431
        %1507 = vmatpush1.bf16.msra.mxu0 %v1430
        %1508 = vmatprep.subr.bf16.mxu0 0
        %1509 = vmatpush2.bf16.msra.mxu0 0
        %1510 = vmatprep.subr.bf16.mxu0 0
        %1511 = vmatpush2.bf16.msra.mxu0 0
        %1512 = vmatprep.subr.bf16.mxu0 0
        %1513 = vmatpush2.bf16.msra.mxu0 0
        %1514 = vmatprep.subr.bf16.mxu0 %v1455
        %1515 = vmatpush2.bf16.msra.mxu0 %v1454
        %1516 = vmatprep.subr.bf16.mxu0 %v1453
        %1517 = vmatpush2.bf16.msra.mxu0 %v1452
        %1518 = vmatprep.subr.bf16.mxu0 %v1451
        %1519 = vmatpush2.bf16.msra.mxu0 %v1450
        %1520 = vmatprep.subr.bf16.mxu0 %v1449
        %1521 = vmatpush2.bf16.msra.mxu0 %v1448
        %1522 = vmatprep.subr.bf16.mxu0 %v1447
        %1523 = vmatpush2.bf16.msra.mxu0 %v1446
        %1524 = vmatprep.mubr.bf16.mxu0 %v1484
        %1525 = vmatmul.mubr.bf16.gmra.mxu0 %v1341
        %v1526 = vpop.f32.mrf.mxu0
        %v1527 = vadd.f32 0.0, %v1526
        %v1528 = vpop.f32.mrf.mxu0
        %v1529 = vadd.f32 0.0, %v1528
        %v1530 = vpop.f32.mrf.mxu0
        %v1531 = vadd.f32 0.0, %v1530
        %v1532 = vpop.f32.mrf.mxu0
        %v1533 = vadd.f32 0.0, %v1532
        %1534 = vmatprep.mubr.bf16.mxu0 %v1487
        %1535 = vmatmul.mubr.bf16.gmra.mxu0 %v1346
        %v1536 = vpop.f32.mrf.mxu0
        %v1537 = vpop.f32.mrf.mxu0
        %v1538 = vpop.f32.mrf.mxu0
        %v1539 = vpop.f32.mrf.mxu0
        %1540 = vmatprep.mubr.bf16.mxu0 %v1490
        %1541 = vmatmul.mubr.bf16.gmra.mxu0 %v1345
        %v1542 = vpop.f32.mrf.mxu0
        %v1543 = vadd.f32 0.0, %v1542
        %v1544 = vpop.f32.mrf.mxu0
        %v1545 = vadd.f32 0.0, %v1544
        %v1546 = vpop.f32.mrf.mxu0
        %v1547 = vadd.f32 0.0, %v1546
        %v1548 = vpop.f32.mrf.mxu0
        %v1549 = vadd.f32 0.0, %v1548
        %1550 = vdwg.mxu0
        %v1577 = vunpack.c.l.b16 %v1280
        %v1578 = vunpack.c.h.b16 %v1280
        %v1579 = vunpack.c.l.b16 %v1281
        %v1580 = vunpack.c.h.b16 %v1281
        %v1581 = vunpack.c.l.b16 %v1282
        %v1582 = vunpack.c.h.b16 %v1282
        %v1583 = vunpack.c.l.b16 %v1283
        %v1584 = vunpack.c.h.b16 %v1283
        %v1585 = vunpack.c.l.b16 %v1284
        %v1586 = vunpack.c.h.b16 %v1284
        %v1587 = vunpack.c.l.b16 %v1285
        %v1588 = vunpack.c.h.b16 %v1285
        %v1589 = vunpack.c.l.b16 %v1286
        %v1590 = vunpack.c.h.b16 %v1286
        %v1591 = vunpack.c.l.b16 %v1287
        %v1592 = vunpack.c.h.b16 %v1287
        %v1593 = vunpack.c.l.b16 %v1288
        %v1594 = vunpack.c.h.b16 %v1288
        %v1595 = vunpack.c.l.b16 %v1289
        %v1596 = vunpack.c.h.b16 %v1289
        %v1597 = vunpack.c.l.b16 %v1290
        %v1598 = vunpack.c.h.b16 %v1290
        %v1599 = vunpack.c.l.b16 %v1291
        %v1600 = vunpack.c.h.b16 %v1291
        %v1601 = vunpack.c.l.b16 %v1292
        %v1602 = vunpack.c.h.b16 %v1292
        %v1603 = vunpack.c.l.b16 %v1293
        %v1604 = vunpack.c.h.b16 %v1293
        %v1605 = vunpack.c.l.b16 %v1294
        %v1606 = vunpack.c.h.b16 %v1294
        %v1607 = vunpack.c.l.b16 %v1295
        %v1608 = vunpack.c.h.b16 %v1295
        %v1609 = vunpack.c.l.b16 %v1296
        %v1610 = vunpack.c.h.b16 %v1296
        %v1611 = vunpack.c.l.b16 %v1297
        %v1612 = vunpack.c.h.b16 %v1297
        %v1613 = vunpack.c.l.b16 %v1298
        %v1614 = vunpack.c.h.b16 %v1298
        %v1615 = vunpack.c.l.b16 %v1299
        %v1616 = vunpack.c.h.b16 %v1299
        %v1617 = vunpack.c.l.b16 %v1300
        %v1618 = vunpack.c.h.b16 %v1300
        %v1619 = vunpack.c.l.b16 %v1301
        %v1620 = vunpack.c.h.b16 %v1301
        %v1621 = vunpack.c.l.b16 %v1302
        %v1622 = vunpack.c.h.b16 %v1302
        %v1623 = vunpack.c.l.b16 %v1303
        %v1624 = vunpack.c.h.b16 %v1303
        %v1625 = vunpack.c.l.b16 %v1304
        %v1626 = vunpack.c.h.b16 %v1304
        %v1627 = vunpack.c.l.b16 %v1305
        %v1628 = vunpack.c.h.b16 %v1305
        %v1629 = vpack.c.b16 %v1579, %v1577
        %v1630 = vpack.c.b16 %v1580, %v1578
        %v1631 = vpack.c.b16 %v1583, %v1581
        %v1632 = vpack.c.b16 %v1584, %v1582
        %v1633 = vpack.c.b16 %v1587, %v1585
        %v1634 = vpack.c.b16 %v1588, %v1586
        %v1635 = vpack.c.b16 %v1591, %v1589
        %v1636 = vpack.c.b16 %v1592, %v1590
        %v1637 = vpack.c.b16 %v1595, %v1593
        %v1638 = vpack.c.b16 %v1596, %v1594
        %v1639 = vpack.c.b16 %v1599, %v1597
        %v1640 = vpack.c.b16 %v1600, %v1598
        %v1641 = vpack.c.b16 %v1603, %v1601
        %v1642 = vpack.c.b16 %v1604, %v1602
        %v1643 = vpack.c.b16 %v1607, %v1605
        %v1644 = vpack.c.b16 %v1608, %v1606
        %v1645 = vpack.c.b16 %v1611, %v1609
        %v1646 = vpack.c.b16 %v1612, %v1610
        %v1647 = vpack.c.b16 %v1615, %v1613
        %v1648 = vpack.c.b16 %v1616, %v1614
        %v1649 = vpack.c.b16 %v1619, %v1617
        %v1650 = vpack.c.b16 %v1620, %v1618
        %v1651 = vpack.c.b16 %v1623, %v1621
        %v1652 = vpack.c.b16 %v1624, %v1622
        %v1653 = vpack.c.b16 %v1627, %v1625
        %v1654 = vpack.c.b16 %v1628, %v1626
        %v1682 = vsel %vm1482, %v1275, 0
        %v1685 = vsel %vm1482, %v1277, 0
        %v1688 = vsel %vm1482, %v1279, 0
        %1690 = vmatprep.subr.bf16.mxu0 %v1644
        %1691 = vmatpush1.bf16.msra.mxu0 %v1643
        %1692 = vmatprep.subr.bf16.mxu0 %v1642
        %1693 = vmatpush1.bf16.msra.mxu0 %v1641
        %1694 = vmatprep.subr.bf16.mxu0 %v1640
        %1695 = vmatpush1.bf16.msra.mxu0 %v1639
        %1696 = vmatprep.subr.bf16.mxu0 %v1638
        %1697 = vmatpush1.bf16.msra.mxu0 %v1637
        %1698 = vmatprep.subr.bf16.mxu0 %v1636
        %1699 = vmatpush1.bf16.msra.mxu0 %v1635
        %1700 = vmatprep.subr.bf16.mxu0 %v1634
        %1701 = vmatpush1.bf16.msra.mxu0 %v1633
        %1702 = vmatprep.subr.bf16.mxu0 %v1632
        %1703 = vmatpush1.bf16.msra.mxu0 %v1631
        %1704 = vmatprep.subr.bf16.mxu0 %v1630
        %1705 = vmatpush1.bf16.msra.mxu0 %v1629
        %1706 = vmatprep.subr.bf16.mxu0 0
        %1707 = vmatpush2.bf16.msra.mxu0 0
        %1708 = vmatprep.subr.bf16.mxu0 0
        %1709 = vmatpush2.bf16.msra.mxu0 0
        %1710 = vmatprep.subr.bf16.mxu0 0
        %1711 = vmatpush2.bf16.msra.mxu0 0
        %1712 = vmatprep.subr.bf16.mxu0 %v1654
        %1713 = vmatpush2.bf16.msra.mxu0 %v1653
        %1714 = vmatprep.subr.bf16.mxu0 %v1652
        %1715 = vmatpush2.bf16.msra.mxu0 %v1651
        %1716 = vmatprep.subr.bf16.mxu0 %v1650
        %1717 = vmatpush2.bf16.msra.mxu0 %v1649
        %1718 = vmatprep.subr.bf16.mxu0 %v1648
        %1719 = vmatpush2.bf16.msra.mxu0 %v1647
        %1720 = vmatprep.subr.bf16.mxu0 %v1646
        %1721 = vmatpush2.bf16.msra.mxu0 %v1645
        %1722 = vmatprep.mubr.bf16.mxu0 %v1682
        %1723 = vmatmul.mubr.bf16.gmra.mxu0 %v1274
        %v1724 = vpop.f32.mrf.mxu0
        %v1725 = vadd.f32 %v1527, %v1724
        %v1726 = vpop.f32.mrf.mxu0
        %v1727 = vadd.f32 %v1529, %v1726
        %v1728 = vpop.f32.mrf.mxu0
        %v1729 = vadd.f32 %v1531, %v1728
        %v1730 = vpop.f32.mrf.mxu0
        %v1731 = vadd.f32 %v1533, %v1730
        %1732 = vmatprep.mubr.bf16.mxu0 %v1685
        %1733 = vmatmul.mubr.bf16.gmra.mxu0 %v1276
        %v1734 = vpop.f32.mrf.mxu0
        %v1735 = vpop.f32.mrf.mxu0
        %v1736 = vpop.f32.mrf.mxu0
        %v1737 = vpop.f32.mrf.mxu0
        %1738 = vmatprep.mubr.bf16.mxu0 %v1688
        %1739 = vmatmul.mubr.bf16.gmra.mxu0 %v1278
        %v1740 = vpop.f32.mrf.mxu0
        %v1741 = vadd.f32 %v1543, %v1740
        %v1742 = vpop.f32.mrf.mxu0
        %v1743 = vadd.f32 %v1545, %v1742
        %v1744 = vpop.f32.mrf.mxu0
        %v1745 = vadd.f32 %v1547, %v1744
        %v1746 = vpop.f32.mrf.mxu0
        %v1747 = vadd.f32 %v1549, %v1746
        %1748 = vdwg.mxu0
        %s1749 = scalar_lea.vmem %s3, 416
        %v1750 = vld [vmem:[%s1749] sm:$0xff]
        %v1751 = vld [vmem:[%s1749 + $0x8] sm:$0xff]
        %v1752 = vld [vmem:[%s1749 + $0x10] sm:$0xff]
        %v1753 = vld [vmem:[%s1749 + $0x18] sm:$0xff]
        %v1754 = vld [vmem:[%s1749 + $0x20] sm:$0xff]
        %v1755 = vld [vmem:[%s1749 + $0x28] sm:$0xff]
        %v1756 = vld [vmem:[%s1749 + $0x30] sm:$0xff]
        %v1757 = vld [vmem:[%s1749 + $0x38] sm:$0xff]
        %v1758 = vld [vmem:[%s1749 + $0x40] sm:$0xff]
        %v1759 = vld [vmem:[%s1749 + $0x48] sm:$0xff]
        %v1760 = vld [vmem:[%s1749 + $0x50] sm:$0xff]
        %v1761 = vld [vmem:[%s1749 + $0x58] sm:$0xff]
        %v1762 = vld [vmem:[%s1749 + $0x60] sm:$0xff]
        %v1763 = vld [vmem:[%s1749 + $0x68] sm:$0xff]
        %v1764 = vld [vmem:[%s1749 + $0x70] sm:$0xff]
        %v1765 = vld [vmem:[%s1749 + $0x78] sm:$0xff]
        %v1766 = vld [vmem:[%s1749 + $0x80] sm:$0xff]
        %v1767 = vld [vmem:[%s1749 + $0x88] sm:$0xff]
        %v1768 = vld [vmem:[%s1749 + $0x90] sm:$0xff]
        %v1769 = vld [vmem:[%s1749 + $0x98] sm:$0xff]
        %v1770 = vld [vmem:[%s1749 + $0xa0] sm:$0xff]
        %v1771 = vld [vmem:[%s1749 + $0xa8] sm:$0xff]
        %v1772 = vld [vmem:[%s1749 + $0xb0] sm:$0xff]
        %v1773 = vld [vmem:[%s1749 + $0xb8] sm:$0xff]
        %v1774 = vld [vmem:[%s1749 + $0xc0] sm:$0xff]
        %v1775 = vld [vmem:[%s1749 + $0xc8] sm:$0xff]
        %vm1776 = vcmask 1045504
        %v1777 = vrot.slane %v1274, 2
        %v1778 = vrot.slane %v1276, 2
        %v1779 = vsel %vm1776, %v1777, %v1778
        %v1780 = vrot.slane %v1275, 2
        %v1781 = vrot.slane %v1277, 2
        %v1782 = vsel %vm1776, %v1780, %v1781
        %v1783 = vrot.slane %v1278, 2
        %v1784 = vsel %vm1776, %v1778, %v1783
        %v1785 = vrot.slane %v1279, 2
        %v1786 = vsel %vm1776, %v1781, %v1785
        %v1816 = vunpack.c.l.b16 %v1750
        %v1817 = vunpack.c.h.b16 %v1750
        %v1818 = vunpack.c.l.b16 %v1751
        %v1819 = vunpack.c.h.b16 %v1751
        %v1820 = vunpack.c.l.b16 %v1752
        %v1821 = vunpack.c.h.b16 %v1752
        %v1822 = vunpack.c.l.b16 %v1753
        %v1823 = vunpack.c.h.b16 %v1753
        %v1824 = vunpack.c.l.b16 %v1754
        %v1825 = vunpack.c.h.b16 %v1754
        %v1826 = vunpack.c.l.b16 %v1755
        %v1827 = vunpack.c.h.b16 %v1755
        %v1828 = vunpack.c.l.b16 %v1756
        %v1829 = vunpack.c.h.b16 %v1756
        %v1830 = vunpack.c.l.b16 %v1757
        %v1831 = vunpack.c.h.b16 %v1757
        %v1832 = vunpack.c.l.b16 %v1758
        %v1833 = vunpack.c.h.b16 %v1758
        %v1834 = vunpack.c.l.b16 %v1759
        %v1835 = vunpack.c.h.b16 %v1759
        %v1836 = vunpack.c.l.b16 %v1760
        %v1837 = vunpack.c.h.b16 %v1760
        %v1838 = vunpack.c.l.b16 %v1761
        %v1839 = vunpack.c.h.b16 %v1761
        %v1840 = vunpack.c.l.b16 %v1762
        %v1841 = vunpack.c.h.b16 %v1762
        %v1842 = vunpack.c.l.b16 %v1763
        %v1843 = vunpack.c.h.b16 %v1763
        %v1844 = vunpack.c.l.b16 %v1764
        %v1845 = vunpack.c.h.b16 %v1764
        %v1846 = vunpack.c.l.b16 %v1765
        %v1847 = vunpack.c.h.b16 %v1765
        %v1848 = vunpack.c.l.b16 %v1766
        %v1849 = vunpack.c.h.b16 %v1766
        %v1850 = vunpack.c.l.b16 %v1767
        %v1851 = vunpack.c.h.b16 %v1767
        %v1852 = vunpack.c.l.b16 %v1768
        %v1853 = vunpack.c.h.b16 %v1768
        %v1854 = vunpack.c.l.b16 %v1769
        %v1855 = vunpack.c.h.b16 %v1769
        %v1856 = vunpack.c.l.b16 %v1770
        %v1857 = vunpack.c.h.b16 %v1770
        %v1858 = vunpack.c.l.b16 %v1771
        %v1859 = vunpack.c.h.b16 %v1771
        %v1860 = vunpack.c.l.b16 %v1772
        %v1861 = vunpack.c.h.b16 %v1772
        %v1862 = vunpack.c.l.b16 %v1773
        %v1863 = vunpack.c.h.b16 %v1773
        %v1864 = vunpack.c.l.b16 %v1774
        %v1865 = vunpack.c.h.b16 %v1774
        %v1866 = vunpack.c.l.b16 %v1775
        %v1867 = vunpack.c.h.b16 %v1775
        %v1868 = vpack.c.b16 %v1818, %v1816
        %v1869 = vpack.c.b16 %v1819, %v1817
        %v1870 = vpack.c.b16 %v1822, %v1820
        %v1871 = vpack.c.b16 %v1823, %v1821
        %v1872 = vpack.c.b16 %v1826, %v1824
        %v1873 = vpack.c.b16 %v1827, %v1825
        %v1874 = vpack.c.b16 %v1830, %v1828
        %v1875 = vpack.c.b16 %v1831, %v1829
        %v1876 = vpack.c.b16 %v1834, %v1832
        %v1877 = vpack.c.b16 %v1835, %v1833
        %v1878 = vpack.c.b16 %v1838, %v1836
        %v1879 = vpack.c.b16 %v1839, %v1837
        %v1880 = vpack.c.b16 %v1842, %v1840
        %v1881 = vpack.c.b16 %v1843, %v1841
        %v1882 = vpack.c.b16 %v1846, %v1844
        %v1883 = vpack.c.b16 %v1847, %v1845
        %v1884 = vpack.c.b16 %v1850, %v1848
        %v1885 = vpack.c.b16 %v1851, %v1849
        %v1886 = vpack.c.b16 %v1854, %v1852
        %v1887 = vpack.c.b16 %v1855, %v1853
        %v1888 = vpack.c.b16 %v1858, %v1856
        %v1889 = vpack.c.b16 %v1859, %v1857
        %v1890 = vpack.c.b16 %v1862, %v1860
        %v1891 = vpack.c.b16 %v1863, %v1861
        %v1892 = vpack.c.b16 %v1866, %v1864
        %v1893 = vpack.c.b16 %v1867, %v1865
        %v1921 = vsel %vm1482, %v1782, 0
        %v1924 = vsel %vm1482, %v1786, 0
        %v1927 = vsel %vm1482, %v1785, 0
        %1929 = vmatprep.subr.bf16.mxu0 %v1883
        %1930 = vmatpush1.bf16.msra.mxu0 %v1882
        %1931 = vmatprep.subr.bf16.mxu0 %v1881
        %1932 = vmatpush1.bf16.msra.mxu0 %v1880
        %1933 = vmatprep.subr.bf16.mxu0 %v1879
        %1934 = vmatpush1.bf16.msra.mxu0 %v1878
        %1935 = vmatprep.subr.bf16.mxu0 %v1877
        %1936 = vmatpush1.bf16.msra.mxu0 %v1876
        %1937 = vmatprep.subr.bf16.mxu0 %v1875
        %1938 = vmatpush1.bf16.msra.mxu0 %v1874
        %1939 = vmatprep.subr.bf16.mxu0 %v1873
        %1940 = vmatpush1.bf16.msra.mxu0 %v1872
        %1941 = vmatprep.subr.bf16.mxu0 %v1871
        %1942 = vmatpush1.bf16.msra.mxu0 %v1870
        %1943 = vmatprep.subr.bf16.mxu0 %v1869
        %1944 = vmatpush1.bf16.msra.mxu0 %v1868
        %1945 = vmatprep.subr.bf16.mxu0 0
        %1946 = vmatpush2.bf16.msra.mxu0 0
        %1947 = vmatprep.subr.bf16.mxu0 0
        %1948 = vmatpush2.bf16.msra.mxu0 0
        %1949 = vmatprep.subr.bf16.mxu0 0
        %1950 = vmatpush2.bf16.msra.mxu0 0
        %1951 = vmatprep.subr.bf16.mxu0 %v1893
        %1952 = vmatpush2.bf16.msra.mxu0 %v1892
        %1953 = vmatprep.subr.bf16.mxu0 %v1891
        %1954 = vmatpush2.bf16.msra.mxu0 %v1890
        %1955 = vmatprep.subr.bf16.mxu0 %v1889
        %1956 = vmatpush2.bf16.msra.mxu0 %v1888
        %1957 = vmatprep.subr.bf16.mxu0 %v1887
        %1958 = vmatpush2.bf16.msra.mxu0 %v1886
        %1959 = vmatprep.subr.bf16.mxu0 %v1885
        %1960 = vmatpush2.bf16.msra.mxu0 %v1884
        %1961 = vmatprep.mubr.bf16.mxu0 %v1921
        %1962 = vmatmul.mubr.bf16.gmra.mxu0 %v1779
        %v1963 = vpop.f32.mrf.mxu0
        %v1964 = vadd.f32 0.0, %v1963
        %v1965 = vpop.f32.mrf.mxu0
        %v1966 = vadd.f32 0.0, %v1965
        %v1967 = vpop.f32.mrf.mxu0
        %v1968 = vadd.f32 0.0, %v1967
        %v1969 = vpop.f32.mrf.mxu0
        %v1970 = vadd.f32 0.0, %v1969
        %1971 = vmatprep.mubr.bf16.mxu0 %v1924
        %1972 = vmatmul.mubr.bf16.gmra.mxu0 %v1784
        %v1973 = vpop.f32.mrf.mxu0
        %v1974 = vpop.f32.mrf.mxu0
        %v1975 = vpop.f32.mrf.mxu0
        %v1976 = vpop.f32.mrf.mxu0
        %1977 = vmatprep.mubr.bf16.mxu0 %v1927
        %1978 = vmatmul.mubr.bf16.gmra.mxu0 %v1783
        %v1979 = vpop.f32.mrf.mxu0
        %v1980 = vadd.f32 0.0, %v1979
        %v1981 = vpop.f32.mrf.mxu0
        %v1982 = vadd.f32 0.0, %v1981
        %v1983 = vpop.f32.mrf.mxu0
        %v1984 = vadd.f32 0.0, %v1983
        %v1985 = vpop.f32.mrf.mxu0
        %v1986 = vadd.f32 0.0, %v1985
        %1987 = vdwg.mxu0
        %v1988 = vadd.f32 %v1725, %v1964
        %v1989 = vadd.f32 %v1727, %v1966
        %v1990 = vadd.f32 %v1729, %v1968
        %v1991 = vadd.f32 %v1731, %v1970
        %v1992 = vadd.f32 %v1741, %v1980
        %v1993 = vadd.f32 %v1743, %v1982
        %v1994 = vadd.f32 %v1745, %v1984
        %v1995 = vadd.f32 %v1747, %v1986
        %v1996 = vld [vmem:[%s4] sm:$0x3]
        %v1998 = vlaneseq
        %v1999 = vshrl.u32 %v1998, 7
        %v2000 = vsub.s32 0, %v1999
        %v2001 = vrot.slane %v1996, %v2000
        %v2002 = vlaneseq
        %v2003 = vshrl.u32 %v2002, 7
        %v2004 = vsub.s32 1, %v2003
        %v2005 = vrot.slane %v1996, %v2004
        %v2008 = vadd.f32 %v1988, %v2001
        %v2009 = vadd.f32 %v1989, %v2005
        %v2010 = vadd.f32 %v1990, %v2001
        %v2011 = vadd.f32 %v1991, %v2005
        %v2012 = vadd.f32 %v1992, %v2001
        %v2013 = vadd.f32 %v1993, %v2005
        %v2014 = vadd.f32 %v1994, %v2001
        %v2015 = vadd.f32 %v1995, %v2005
        %2024 = vrot.lane.b32.xlu0 %v2008, 96
        %v2025 = vpop.permute.xlu0 %2024
        %2026 = vrot.lane.b32.xlu0 %v2009, 96
        %v2027 = vpop.permute.xlu0 %2026
        %2028 = vrot.lane.b32.xlu0 %v2010, 96
        %v2029 = vpop.permute.xlu0 %2028
        %2030 = vrot.lane.b32.xlu0 %v2011, 96
        %v2031 = vpop.permute.xlu0 %2030
        %2032 = vrot.lane.b32.xlu0 %v2012, 96
        %v2033 = vpop.permute.xlu0 %2032
        %2034 = vrot.lane.b32.xlu0 %v2013, 96
        %v2035 = vpop.permute.xlu0 %2034
        %2036 = vrot.lane.b32.xlu0 %v2014, 96
        %v2037 = vpop.permute.xlu0 %2036
        %2038 = vrot.lane.b32.xlu0 %v2015, 96
        %v2039 = vpop.permute.xlu0 %2038
        %v2040 = vsel %vm304, %v2025, %v2027
        %v2041 = vsel %vm304, %v2029, %v2031
        %v2042 = vsel %vm304, %v2033, %v2035
        %v2043 = vsel %vm304, %v2037, %v2039
        %v2048 = vmax.f32 %v2008, %v2040
        %v2049 = vmax.f32 %v2010, %v2041
        %v2050 = vmax.f32 %v2012, %v2042
        %v2051 = vmax.f32 %v2014, %v2043
        %vm2056 = vcmask 1045504
        %v2057 = vrot.slane %v2048, 2
        %v2058 = vrot.slane %v2049, 2
        %v2059 = vsel %vm2056, %v2057, %v2058
        %v2060 = vrot.slane %v2050, 2
        %v2061 = vrot.slane %v2051, 2
        %v2062 = vsel %vm2056, %v2060, %v2061
        %v2065 = vmax.f32 %v2048, %v2059
        %v2066 = vmax.f32 %v2050, %v2062
        %v2067 = vmax.f32 %v2065, %v2066
        %v2069 = vrot.slane %v2067, 4
        %v2071 = vpack.c.bf16 %v2067, %v2067
        %v2072 = vpack.c.bf16 %v2069, %v2069
        %v2073 = vld [vmem:[%s5] sm:$0xf]
        %v2074 = vld [vmem:[%s5 + $0x4] sm:$0xf]
        %v2075 = vld [vmem:[%s5 + $0x8] sm:$0xf]
        %v2076 = vld [vmem:[%s5 + $0xc] sm:$0xf]
        %v2077 = vld [vmem:[%s5 + $0x10] sm:$0xf]
        %v2078 = vld [vmem:[%s5 + $0x14] sm:$0xf]
        %v2079 = vld [vmem:[%s5 + $0x18] sm:$0xf]
        %v2080 = vld [vmem:[%s5 + $0x1c] sm:$0xf]
        %v2081 = vld [vmem:[%s5 + $0x20] sm:$0xf]
        %v2082 = vld [vmem:[%s5 + $0x24] sm:$0xf]
        %v2083 = vld [vmem:[%s5 + $0x28] sm:$0xf]
        %v2084 = vld [vmem:[%s5 + $0x2c] sm:$0xf]
        %v2085 = vld [vmem:[%s5 + $0x30] sm:$0xf]
        %v2086 = vld [vmem:[%s5 + $0x34] sm:$0xf]
        %v2087 = vld [vmem:[%s5 + $0x38] sm:$0xf]
        %v2088 = vld [vmem:[%s5 + $0x3c] sm:$0xf]
        %v2089 = vld [vmem:[%s5 + $0x40] sm:$0xf]
        %v2090 = vld [vmem:[%s5 + $0x44] sm:$0xf]
        %v2091 = vld [vmem:[%s5 + $0x48] sm:$0xf]
        %v2092 = vld [vmem:[%s5 + $0x4c] sm:$0xf]
        %v2093 = vld [vmem:[%s5 + $0x50] sm:$0xf]
        %v2094 = vld [vmem:[%s5 + $0x54] sm:$0xf]
        %v2095 = vld [vmem:[%s5 + $0x58] sm:$0xf]
        %v2096 = vld [vmem:[%s5 + $0x5c] sm:$0xf]
        %v2097 = vld [vmem:[%s5 + $0x60] sm:$0xf]
        %v2098 = vld [vmem:[%s5 + $0x64] sm:$0xf]
        %v2099 = vld [vmem:[%s5 + $0x68] sm:$0xf]
        %v2100 = vld [vmem:[%s5 + $0x6c] sm:$0xf]
        %v2101 = vld [vmem:[%s5 + $0x70] sm:$0xf]
        %v2102 = vld [vmem:[%s5 + $0x74] sm:$0xf]
        %v2103 = vld [vmem:[%s5 + $0x78] sm:$0xf]
        %v2104 = vld [vmem:[%s5 + $0x7c] sm:$0xf]
        %v2105 = vld [vmem:[%s6] sm:$0x1]
        %v2138 = vunpack.c.l.b16 %v2073
        %v2139 = vunpack.c.l.b16 %v2074
        %v2140 = vunpack.c.l.b16 %v2075
        %v2141 = vunpack.c.l.b16 %v2076
        %v2142 = vunpack.c.l.b16 %v2077
        %v2143 = vunpack.c.l.b16 %v2078
        %v2144 = vunpack.c.l.b16 %v2079
        %v2145 = vunpack.c.l.b16 %v2080
        %v2146 = vunpack.c.l.b16 %v2081
        %v2147 = vunpack.c.l.b16 %v2082
        %v2148 = vunpack.c.l.b16 %v2083
        %v2149 = vunpack.c.l.b16 %v2084
        %v2150 = vunpack.c.l.b16 %v2085
        %v2151 = vunpack.c.l.b16 %v2086
        %v2152 = vunpack.c.l.b16 %v2087
        %v2153 = vunpack.c.l.b16 %v2088
        %v2154 = vunpack.c.l.b16 %v2089
        %v2155 = vunpack.c.l.b16 %v2090
        %v2156 = vunpack.c.l.b16 %v2091
        %v2157 = vunpack.c.l.b16 %v2092
        %v2158 = vunpack.c.l.b16 %v2093
        %v2159 = vunpack.c.l.b16 %v2094
        %v2160 = vunpack.c.l.b16 %v2095
        %v2161 = vunpack.c.l.b16 %v2096
        %v2162 = vunpack.c.l.b16 %v2097
        %v2163 = vunpack.c.l.b16 %v2098
        %v2164 = vunpack.c.l.b16 %v2099
        %v2165 = vunpack.c.l.b16 %v2100
        %v2166 = vunpack.c.l.b16 %v2101
        %v2167 = vunpack.c.l.b16 %v2102
        %v2168 = vunpack.c.l.b16 %v2103
        %v2169 = vunpack.c.l.b16 %v2104
        %v2170 = vpack.c.b16 %v2139, %v2138
        %v2171 = vpack.c.b16 %v2141, %v2140
        %v2172 = vpack.c.b16 %v2143, %v2142
        %v2173 = vpack.c.b16 %v2145, %v2144
        %v2174 = vpack.c.b16 %v2147, %v2146
        %v2175 = vpack.c.b16 %v2149, %v2148
        %v2176 = vpack.c.b16 %v2151, %v2150
        %v2177 = vpack.c.b16 %v2153, %v2152
        %v2178 = vpack.c.b16 %v2155, %v2154
        %v2179 = vpack.c.b16 %v2157, %v2156
        %v2180 = vpack.c.b16 %v2159, %v2158
        %v2181 = vpack.c.b16 %v2161, %v2160
        %v2182 = vpack.c.b16 %v2163, %v2162
        %v2183 = vpack.c.b16 %v2165, %v2164
        %v2184 = vpack.c.b16 %v2167, %v2166
        %v2185 = vpack.c.b16 %v2169, %v2168
        %2202 = vmatprep.subr.bf16.mxu0 0
        %2203 = vmatpush1.bf16.msra.mxu0 %v2177
        %2204 = vmatprep.subr.bf16.mxu0 0
        %2205 = vmatpush1.bf16.msra.mxu0 %v2176
        %2206 = vmatprep.subr.bf16.mxu0 0
        %2207 = vmatpush1.bf16.msra.mxu0 %v2175
        %2208 = vmatprep.subr.bf16.mxu0 0
        %2209 = vmatpush1.bf16.msra.mxu0 %v2174
        %2210 = vmatprep.subr.bf16.mxu0 0
        %2211 = vmatpush1.bf16.msra.mxu0 %v2173
        %2212 = vmatprep.subr.bf16.mxu0 0
        %2213 = vmatpush1.bf16.msra.mxu0 %v2172
        %2214 = vmatprep.subr.bf16.mxu0 0
        %2215 = vmatpush1.bf16.msra.mxu0 %v2171
        %2216 = vmatprep.subr.bf16.mxu0 0
        %2217 = vmatpush1.bf16.msra.mxu0 %v2170
        %2218 = vmatprep.subr.bf16.mxu0 0
        %2219 = vmatpush2.bf16.msra.mxu0 %v2185
        %2220 = vmatprep.subr.bf16.mxu0 0
        %2221 = vmatpush2.bf16.msra.mxu0 %v2184
        %2222 = vmatprep.subr.bf16.mxu0 0
        %2223 = vmatpush2.bf16.msra.mxu0 %v2183
        %2224 = vmatprep.subr.bf16.mxu0 0
        %2225 = vmatpush2.bf16.msra.mxu0 %v2182
        %2226 = vmatprep.subr.bf16.mxu0 0
        %2227 = vmatpush2.bf16.msra.mxu0 %v2181
        %2228 = vmatprep.subr.bf16.mxu0 0
        %2229 = vmatpush2.bf16.msra.mxu0 %v2180
        %2230 = vmatprep.subr.bf16.mxu0 0
        %2231 = vmatpush2.bf16.msra.mxu0 %v2179
        %2232 = vmatprep.subr.bf16.mxu0 0
        %2233 = vmatpush2.bf16.msra.mxu0 %v2178
        %2234 = vmatprep.mubr.bf16.mxu0 %v2072
        %2235 = vmatmul.mubr.bf16.gmra.mxu0 %v2071
        %v2236 = vpop.f32.mrf.mxu0
        %v2237 = vadd.f32 %v2105, %v2236
        %v2238 = vpop.f32.mrf.mxu0
        %v2239 = vpop.f32.mrf.mxu0
        %v2240 = vpop.f32.mrf.mxu0
        %2241 = vdwg.mxu0
        %2242 = vst [vmem:[%s270] sm:$0x1] %v2237
        %s2243 = sand.u32 %s181, 1
        %s2244 = scalar_lea.sflag [#allocation3], %s2243
        %s2245 = sand.u32 %s181, 1
        %s2246 = scalar_lea.vmem [#allocation2], %s2245
        // Predicated region
        $region49: #{forward.1} parent=47 // pred_check
          %p2247 = pneg %p191
        $region50: #{forward.1} parent=47 // pred_check_branch
          %2249 = sbr.rel (%p2247) target = $region52
        $region51: #{forward.1} parent=47 // pred_region
          %s2251 = ssub.s32 16, 16
          %2252 = vsyncadd %s2244, %s2251
          %s2253 = smul.addr %s21, 16
          %s2254 = scalar_lea.hbm %s7, %s2253
          %s2256 = sshll.u32 %s2246, 4
          %s2257 = int_to_ptr.vmem [resolvable:$true] %s2256
          %2259 = dma.vmem_to_hbm [thread:$0]  %s2257, 16, %s2254, %s2244
        $region52: #{forward.1} parent=47 // pred_fallthru
          _
      $region48: #{forward.1} parent=5 // pred_fallthru
        _
      %p2260 = scmp.le.s32.totalorder 2, %s16
      // Predicated region
      $region53: #{forward.1} parent=5 // pred_check
        %p2261 = pneg %p2260
      $region54: #{forward.1} parent=5 // pred_check_branch
        %2263 = sbr.rel (%p2261) target = $region56
      $region55: #{forward.1} parent=5 // pred_region
        %s2264 = ssub.s32 %s16, 2
        // Predicated region
        $region57: #{forward.1} parent=55 // pred_check
          %p2265 = pneg %p197
        $region58: #{forward.1} parent=55 // pred_check_branch
          %2267 = sbr.rel (%p2265) target = $region60
        $region59: #{forward.1} parent=55 // pred_region
          %s2268 = sand.u32 %s182, 1
          %s2269 = scalar_lea.sflag [#allocation3], %s2268
          %s2270 = sand.u32 %s182, 1
          %s2271 = scalar_lea.vmem [#allocation2], %s2270
          %2272 = dma.done %s2269, 16
        $region60: #{forward.1} parent=55 // pred_fallthru
          _
      $region56: #{forward.1} parent=5 // pred_fallthru
        _
    $region6: #{forward.1} parent=1 // loop_footer
      %s20 = sadd.s32 1, %s16
    $region7: #{forward.1} parent=1 // loop_footer_branch
      %15 = sbr.rel target = $region3
    $region8: #{forward.1} parent=1 // loop_exit
      _
    %2273 = vsyncpa [#allocation3], 1
    %s2274 = scalar_lea.sflag [#allocation3], 1
    %2275 = vsyncpa %s2274, 1

</llo_original>
